<compile_context>
chip_gen: v7x
topology: tpu7x:2x2x1
jax: 0.10.0
libtpu: 0.0.40
codegen_flags: <defaults>
</compile_context>

<pallas_src>
import functools

import jax
import jax.numpy as jnp
from jax import lax
from jax.experimental import pallas as pl
from jax.experimental.pallas import tpu as pltpu


def _round_up(x, m):
    return (x + m - 1) // m * m


def _lstm_recurrent_kernel(gx_ref, whh_ref, h_out_ref, h_sc, c_sc, *, tc):
    """Sequential LSTM recurrence over one time chunk.

    gx_ref    : (TC, BB, 4*HP)  precomputed x@W_ih^T + bias for this chunk
    whh_ref   : (HP, 4*HP)      hidden->gates weights (transposed, gate-padded)
    h_out_ref : (TC, BB, HP)    hidden states emitted for this chunk
    h_sc,c_sc : (BB, HP) f32    state carried across time chunks (grid axis 1)
    """
    t = pl.program_id(1)

    @pl.when(t == 0)
    def _():
        h_sc[...] = jnp.zeros_like(h_sc)
        c_sc[...] = jnp.zeros_like(c_sc)

    hp = h_sc.shape[1]
    whh = whh_ref[...]

    def step(s, carry):
        h, c = carry
        # Only the hidden->gates matmul stays inside the recurrence.
        gates = gx_ref[s] + jnp.dot(h, whh, preferred_element_type=jnp.float32)
        # Gate boundaries are multiples of 128 lanes -> pure VPU/EUP, no XLU.
        i_g = jax.nn.sigmoid(gates[:, 0 * hp:1 * hp])
        f_g = jax.nn.sigmoid(gates[:, 1 * hp:2 * hp])
        g_g = jnp.tanh(gates[:, 2 * hp:3 * hp])
        o_g = jax.nn.sigmoid(gates[:, 3 * hp:4 * hp])
        c = f_g * c + i_g * g_g
        h = o_g * jnp.tanh(c)
        h_out_ref[s] = h.astype(h_out_ref.dtype)
        return (h, c)

    # Unrolled so the LLO scheduler can co-issue the MXU push of step s+1 with
    # the VPU/EUP gate math of step s.
    h_new, c_new = lax.fori_loop(0, tc, step, (h_sc[...], c_sc[...]),
                                 unroll=True)
    h_sc[...] = h_new
    c_sc[...] = c_new


def lstm_forward(x, params, *, time_chunk=8):
    """x: (B, T, D) batch_first float32.  Returns (B, T, O)."""
    w_ih, w_hh = params["w_ih"], params["w_hh"]
    b_ih, b_hh = params["b_ih"], params["b_hh"]
    w_fc, b_fc = params["w_fc"], params["b_fc"]

    B, T, D = x.shape
    H = w_hh.shape[1]
    O = w_fc.shape[0]

    f32 = jnp.float32
    x = x.astype(f32)

    HP = _round_up(H, 128)                      # lane-aligned hidden size
    BB = 128 if B > 128 else _round_up(B, 8)    # sublane-aligned batch block
    BP = _round_up(B, BB)                       # padded batch
    TC = int(time_chunk)
    TP = _round_up(T, TC)                       # padded sequence length

    # ---- hoisted input projection: one big (B*T, D) @ (D, 4H) matmul ----
    gx = jnp.einsum("btd,gd->btg", x, w_ih.astype(f32)) \
        + (b_ih + b_hh).astype(f32)                              # (B, T, 4H)
    # Pad per-gate H -> HP so gate boundaries are lane-aligned; pad B, T.
    gx = gx.reshape(B, T, 4, H)
    gx = jnp.pad(gx, ((0, BP - B), (0, TP - T), (0, 0), (0, HP - H)))
    gx = gx.reshape(BP, TP, 4 * HP)
    gx_tm = jnp.transpose(gx, (1, 0, 2))        # (TP, BP, 4*HP), time-major

    # Gate-padded, transposed recurrent weights: (HP, 4*HP), zero padding.
    whh_p = jnp.pad(w_hh.astype(f32).T.reshape(H, 4, H),
                    ((0, HP - H), (0, 0), (0, HP - H))).reshape(HP, 4 * HP)

    kernel = functools.partial(_lstm_recurrent_kernel, tc=TC)

    h_all = pl.pallas_call(
        kernel,
        out_shape=jax.ShapeDtypeStruct((TP, BP, HP), f32),
        grid_spec=pltpu.PrefetchScalarGridSpec(
            num_scalar_prefetch=0,
            grid=(BP // BB, TP // TC),
            in_specs=[
                pl.BlockSpec((TC, BB, 4 * HP), lambda b, t: (t, b, 0)),  # gx
                pl.BlockSpec((HP, 4 * HP), lambda b, t: (0, 0)),         # w_hh
            ],
            out_specs=pl.BlockSpec((TC, BB, HP), lambda b, t: (t, b, 0)),
            scratch_shapes=[
                pltpu.VMEM((BB, HP), f32),   # h state (carried across chunks)
                pltpu.VMEM((BB, HP), f32),   # c state
            ],
        ),
        compiler_params=pltpu.CompilerParams(
            # Batch blocks are independent (megacore sharding on v7x);
            # time is the recurrence and must stay sequential.
            dimension_semantics=("parallel", "arbitrary"),
        ),
    )(gx_tm, whh_p)

    # ---- hoisted FC head: one big (B*T, H) @ (H, O) matmul ----
    h_all = jnp.transpose(h_all, (1, 0, 2))[:B, :T, :H]          # (B, T, H)
    y = jnp.einsum("bth,oh->bto", h_all, w_fc.astype(f32)) + b_fc.astype(f32)
    return y


def init_params(key, input_dim=5, hidden_dim=16, output_dim=1):
    """Deterministic init mimicking PyTorch default U(-1/sqrt(H), 1/sqrt(H))."""
    ks = jax.random.split(key, 6)
    bound = 1.0 / jnp.sqrt(hidden_dim)

    def u(k, shape):
        return jax.random.uniform(k, shape, jnp.float32, -bound, bound)

    return dict(
        w_ih=u(ks[0], (4 * hidden_dim, input_dim)),
        w_hh=u(ks[1], (4 * hidden_dim, hidden_dim)),
        b_ih=u(ks[2], (4 * hidden_dim,)),
        b_hh=u(ks[3], (4 * hidden_dim,)),
        w_fc=u(ks[4], (output_dim, hidden_dim)),
        b_fc=u(ks[5], (output_dim,)),
    )


def lstm_reference(x, params):
    """Pure-JAX reference (lax.scan) for correctness checking."""
    w_ih, w_hh = params["w_ih"], params["w_hh"]
    b = params["b_ih"] + params["b_hh"]
    w_fc, b_fc = params["w_fc"], params["b_fc"]
    B = x.shape[0]
    H = w_hh.shape[1]

    def step(carry, x_t):
        h, c = carry
        gates = x_t @ w_ih.T + h @ w_hh.T + b
        i, f, g, o = jnp.split(gates, 4, axis=-1)
        c = jax.nn.sigmoid(f) * c + jax.nn.sigmoid(i) * jnp.tanh(g)
        h = jax.nn.sigmoid(o) * jnp.tanh(c)
        return (h, c), h

    h0 = jnp.zeros((B, H), jnp.float32)
    c0 = jnp.zeros((B, H), jnp.float32)
    _, hs = jax.lax.scan(step, (h0, c0), jnp.transpose(x, (1, 0, 2)))
    y = hs @ w_fc.T + b_fc
    return jnp.transpose(y, (1, 0, 2))


if __name__ == "__main__":
    key = jax.random.PRNGKey(0)
    k_p, k_x1, k_x2 = jax.random.split(key, 3)

    B, T, D, H, O = 2, 8, 5, 16, 1
    params = init_params(k_p, input_dim=D, hidden_dim=H, output_dim=O)

    # Case 1: T exactly one time chunk.
    x = jax.random.normal(k_x1, (B, T, D), jnp.float32)
    y = jax.block_until_ready(lstm_forward(x, params, time_chunk=8))
    y_ref = jax.block_until_ready(lstm_reference(x, params))
    assert y.shape == (B, T, O)
    assert jnp.allclose(y, y_ref, atol=1e-2, rtol=1e-2), "mismatch vs reference"

    # Case 2: T not a multiple of the time chunk (exercises time padding).
    T2 = 13
    x2 = jax.random.normal(k_x2, (B, T2, D), jnp.float32)
    y2 = jax.block_until_ready(lstm_forward(x2, params, time_chunk=8))
    y2_ref = jax.block_until_ready(lstm_reference(x2, params))
    assert y2.shape == (B, T2, O)
    assert jnp.allclose(y2, y2_ref, atol=1e-2, rtol=1e-2), \
        "mismatch vs reference (padded T)"

    print("KERNEL_OK")
</pallas_src>

<mosaic_0001>
module attributes {stable_mosaic.version = 11 : i64} {
  func.func @_lstm_recurrent_kernel(%arg0: i32, %arg1: i32, %arg2: memref<8x8x512xf32, #tpu.memory_space<vmem>>, %arg3: memref<128x512xf32, #tpu.memory_space<vmem>>, %arg4: memref<8x8x128xf32, #tpu.memory_space<vmem>>, %arg5: memref<8x128xf32, #tpu.memory_space<vmem>>, %arg6: memref<8x128xf32, #tpu.memory_space<vmem>>) attributes {dimension_semantics = [#tpu.dimension_semantics<parallel>, #tpu.dimension_semantics<arbitrary>], iteration_bounds = array<i64: 1, 1>, scalar_prefetch = 0 : i64, scratch_operands = 2 : i64, tpu.core_type = #tpu.core_type<tc>, window_params = [{transform_indices = @transform_0, window_bounds = array<i64: 8, 8, 512>}, {pipeline_mode = #tpu.pipeline_mode<synchronous>, transform_indices = @transform_1, window_bounds = array<i64: 128, 512>}, {transform_indices = @transform_2, window_bounds = array<i64: 8, 8, 128>}]} {
    %c0_i32 = arith.constant 0 : i32
    %0 = arith.cmpi eq, %arg1, %c0_i32 : i32
    %1 = arith.extui %0 : i1 to i32
    %c0_i32_0 = arith.constant 0 : i32
    %2 = arith.cmpi ne, %1, %c0_i32_0 : i32
    scf.if %2 {
      %cst_74 = arith.constant 0.000000e+00 : f32
      %280 = vector.broadcast %cst_74 : f32 to vector<8x128xf32>
      %c0_75 = arith.constant 0 : index
      %c0_76 = arith.constant 0 : index
      %281 = vector.load %arg5[%c0_75, %c0_76] : memref<8x128xf32, #tpu.memory_space<vmem>>, vector<8x128xf32>
      tpu.vector_store %arg5[%c0_75, %c0_76], %280 {strides = array<i32>} : memref<8x128xf32, #tpu.memory_space<vmem>>, vector<8x128xf32>,
      %cst_77 = arith.constant 0.000000e+00 : f32
      %282 = vector.broadcast %cst_77 : f32 to vector<8x128xf32>
      %c0_78 = arith.constant 0 : index
      %c0_79 = arith.constant 0 : index
      %283 = vector.load %arg6[%c0_78, %c0_79] : memref<8x128xf32, #tpu.memory_space<vmem>>, vector<8x128xf32>
      tpu.vector_store %arg6[%c0_78, %c0_79], %282 {strides = array<i32>} : memref<8x128xf32, #tpu.memory_space<vmem>>, vector<8x128xf32>,
    } else {
    }
    %c0 = arith.constant 0 : index
    %c0_1 = arith.constant 0 : index
    %3 = vector.load %arg3[%c0, %c0_1] : memref<128x512xf32, #tpu.memory_space<vmem>>, vector<128x512xf32>
    %c0_2 = arith.constant 0 : index
    %c0_3 = arith.constant 0 : index
    %4 = vector.load %arg5[%c0_2, %c0_3] : memref<8x128xf32, #tpu.memory_space<vmem>>, vector<8x128xf32>
    %c0_4 = arith.constant 0 : index
    %c0_5 = arith.constant 0 : index
    %5 = vector.load %arg6[%c0_4, %c0_5] : memref<8x128xf32, #tpu.memory_space<vmem>>, vector<8x128xf32>
    %c0_i32_6 = arith.constant 0 : i32
    %6 = arith.index_cast %c0_i32_6 : i32 to index
    %c0_7 = arith.constant 0 : index
    %c0_8 = arith.constant 0 : index
    %7 = vector.load %arg2[%6, %c0_7, %c0_8] : memref<8x8x512xf32, #tpu.memory_space<vmem>>, vector<1x8x512xf32>
    %8 = vector.shape_cast %7 : vector<1x8x512xf32> to vector<8x512xf32>
    %cst = arith.constant dense<0.000000e+00> : vector<8x512xf32>
    %9 = tpu.matmul %4, %3, %cst {dimension_numbers = #tpu.dot_dimension_numbers<[1], [0], [0], [1], [0, 0, 1, 1], [], []>} : vector<8x128xf32>, vector<128x512xf32>, vector<8x512xf32> -> vector<8x512xf32>
    %10 = arith.addf %8, %9 : vector<8x512xf32>
    %11 = vector.extract_strided_slice %10 {offsets = [0, 0], sizes = [8, 128], strides = [1, 1]} : vector<8x512xf32> to vector<8x128xf32>
    %12 = arith.negf %11 : vector<8x128xf32>
    %13 = math.exp %12 : vector<8x128xf32>
    %cst_9 = arith.constant 1.000000e+00 : f32
    %14 = vector.broadcast %cst_9 : f32 to vector<8x128xf32>
    %15 = arith.addf %14, %13 : vector<8x128xf32>
    %16 = arith.divf %14, %15 : vector<8x128xf32>
    %17 = vector.extract_strided_slice %10 {offsets = [0, 128], sizes = [8, 128], strides = [1, 1]} : vector<8x512xf32> to vector<8x128xf32>
    %18 = arith.negf %17 : vector<8x128xf32>
    %19 = math.exp %18 : vector<8x128xf32>
    %cst_10 = arith.constant 1.000000e+00 : f32
    %20 = vector.broadcast %cst_10 : f32 to vector<8x128xf32>
    %21 = arith.addf %20, %19 : vector<8x128xf32>
    %22 = arith.divf %20, %21 : vector<8x128xf32>
    %23 = vector.extract_strided_slice %10 {offsets = [0, 256], sizes = [8, 128], strides = [1, 1]} : vector<8x512xf32> to vector<8x128xf32>
    %24 = math.tanh %23 : vector<8x128xf32>
    %25 = vector.extract_strided_slice %10 {offsets = [0, 384], sizes = [8, 128], strides = [1, 1]} : vector<8x512xf32> to vector<8x128xf32>
    %26 = arith.negf %25 : vector<8x128xf32>
    %27 = math.exp %26 : vector<8x128xf32>
    %cst_11 = arith.constant 1.000000e+00 : f32
    %28 = vector.broadcast %cst_11 : f32 to vector<8x128xf32>
    %29 = arith.addf %28, %27 : vector<8x128xf32>
    %30 = arith.divf %28, %29 : vector<8x128xf32>
    %31 = arith.mulf %22, %5 : vector<8x128xf32>
    %32 = arith.mulf %16, %24 : vector<8x128xf32>
    %33 = arith.addf %31, %32 : vector<8x128xf32>
    %34 = math.tanh %33 : vector<8x128xf32>
    %35 = arith.mulf %30, %34 : vector<8x128xf32>
    %36 = arith.index_cast %c0_i32_6 : i32 to index
    %c0_12 = arith.constant 0 : index
    %c0_13 = arith.constant 0 : index
    %37 = vector.load %arg4[%36, %c0_12, %c0_13] : memref<8x8x128xf32, #tpu.memory_space<vmem>>, vector<1x8x128xf32>
    %38 = vector.shape_cast %37 : vector<1x8x128xf32> to vector<8x128xf32>
    %39 = vector.shape_cast %35 : vector<8x128xf32> to vector<1x8x128xf32>
    tpu.vector_store %arg4[%36, %c0_12, %c0_13], %39 {strides = array<i32>} : memref<8x8x128xf32, #tpu.memory_space<vmem>>, vector<1x8x128xf32>,
    %c1_i32 = arith.constant 1 : i32
    %40 = arith.index_cast %c1_i32 : i32 to index
    %c0_14 = arith.constant 0 : index
    %c0_15 = arith.constant 0 : index
    %41 = vector.load %arg2[%40, %c0_14, %c0_15] : memref<8x8x512xf32, #tpu.memory_space<vmem>>, vector<1x8x512xf32>
    %42 = vector.shape_cast %41 : vector<1x8x512xf32> to vector<8x512xf32>
    %cst_16 = arith.constant dense<0.000000e+00> : vector<8x512xf32>
    %43 = tpu.matmul %35, %3, %cst_16 {dimension_numbers = #tpu.dot_dimension_numbers<[1], [0], [0], [1], [0, 0, 1, 1], [], []>} : vector<8x128xf32>, vector<128x512xf32>, vector<8x512xf32> -> vector<8x512xf32>
    %44 = arith.addf %42, %43 : vector<8x512xf32>
    %45 = vector.extract_strided_slice %44 {offsets = [0, 0], sizes = [8, 128], strides = [1, 1]} : vector<8x512xf32> to vector<8x128xf32>
    %46 = arith.negf %45 : vector<8x128xf32>
    %47 = math.exp %46 : vector<8x128xf32>
    %cst_17 = arith.constant 1.000000e+00 : f32
    %48 = vector.broadcast %cst_17 : f32 to vector<8x128xf32>
    %49 = arith.addf %48, %47 : vector<8x128xf32>
    %50 = arith.divf %48, %49 : vector<8x128xf32>
    %51 = vector.extract_strided_slice %44 {offsets = [0, 128], sizes = [8, 128], strides = [1, 1]} : vector<8x512xf32> to vector<8x128xf32>
    %52 = arith.negf %51 : vector<8x128xf32>
    %53 = math.exp %52 : vector<8x128xf32>
    %cst_18 = arith.constant 1.000000e+00 : f32
    %54 = vector.broadcast %cst_18 : f32 to vector<8x128xf32>
    %55 = arith.addf %54, %53 : vector<8x128xf32>
    %56 = arith.divf %54, %55 : vector<8x128xf32>
    %57 = vector.extract_strided_slice %44 {offsets = [0, 256], sizes = [8, 128], strides = [1, 1]} : vector<8x512xf32> to vector<8x128xf32>
    %58 = math.tanh %57 : vector<8x128xf32>
    %59 = vector.extract_strided_slice %44 {offsets = [0, 384], sizes = [8, 128], strides = [1, 1]} : vector<8x512xf32> to vector<8x128xf32>
    %60 = arith.negf %59 : vector<8x128xf32>
    %61 = math.exp %60 : vector<8x128xf32>
    %cst_19 = arith.constant 1.000000e+00 : f32
    %62 = vector.broadcast %cst_19 : f32 to vector<8x128xf32>
    %63 = arith.addf %62, %61 : vector<8x128xf32>
    %64 = arith.divf %62, %63 : vector<8x128xf32>
    %65 = arith.mulf %56, %33 : vector<8x128xf32>
    %66 = arith.mulf %50, %58 : vector<8x128xf32>
    %67 = arith.addf %65, %66 : vector<8x128xf32>
    %68 = math.tanh %67 : vector<8x128xf32>
    %69 = arith.mulf %64, %68 : vector<8x128xf32>
    %70 = arith.index_cast %c1_i32 : i32 to index
    %c0_20 = arith.constant 0 : index
    %c0_21 = arith.constant 0 : index
    %71 = vector.load %arg4[%70, %c0_20, %c0_21] : memref<8x8x128xf32, #tpu.memory_space<vmem>>, vector<1x8x128xf32>
    %72 = vector.shape_cast %71 : vector<1x8x128xf32> to vector<8x128xf32>
    %73 = vector.shape_cast %69 : vector<8x128xf32> to vector<1x8x128xf32>
    tpu.vector_store %arg4[%70, %c0_20, %c0_21], %73 {strides = array<i32>} : memref<8x8x128xf32, #tpu.memory_space<vmem>>, vector<1x8x128xf32>,
    %c2_i32 = arith.constant 2 : i32
    %74 = arith.index_cast %c2_i32 : i32 to index
    %c0_22 = arith.constant 0 : index
    %c0_23 = arith.constant 0 : index
    %75 = vector.load %arg2[%74, %c0_22, %c0_23] : memref<8x8x512xf32, #tpu.memory_space<vmem>>, vector<1x8x512xf32>
    %76 = vector.shape_cast %75 : vector<1x8x512xf32> to vector<8x512xf32>
    %cst_24 = arith.constant dense<0.000000e+00> : vector<8x512xf32>
    %77 = tpu.matmul %69, %3, %cst_24 {dimension_numbers = #tpu.dot_dimension_numbers<[1], [0], [0], [1], [0, 0, 1, 1], [], []>} : vector<8x128xf32>, vector<128x512xf32>, vector<8x512xf32> -> vector<8x512xf32>
    %78 = arith.addf %76, %77 : vector<8x512xf32>
    %79 = vector.extract_strided_slice %78 {offsets = [0, 0], sizes = [8, 128], strides = [1, 1]} : vector<8x512xf32> to vector<8x128xf32>
    %80 = arith.negf %79 : vector<8x128xf32>
    %81 = math.exp %80 : vector<8x128xf32>
    %cst_25 = arith.constant 1.000000e+00 : f32
    %82 = vector.broadcast %cst_25 : f32 to vector<8x128xf32>
    %83 = arith.addf %82, %81 : vector<8x128xf32>
    %84 = arith.divf %82, %83 : vector<8x128xf32>
    %85 = vector.extract_strided_slice %78 {offsets = [0, 128], sizes = [8, 128], strides = [1, 1]} : vector<8x512xf32> to vector<8x128xf32>
    %86 = arith.negf %85 : vector<8x128xf32>
    %87 = math.exp %86 : vector<8x128xf32>
    %cst_26 = arith.constant 1.000000e+00 : f32
    %88 = vector.broadcast %cst_26 : f32 to vector<8x128xf32>
    %89 = arith.addf %88, %87 : vector<8x128xf32>
    %90 = arith.divf %88, %89 : vector<8x128xf32>
    %91 = vector.extract_strided_slice %78 {offsets = [0, 256], sizes = [8, 128], strides = [1, 1]} : vector<8x512xf32> to vector<8x128xf32>
    %92 = math.tanh %91 : vector<8x128xf32>
    %93 = vector.extract_strided_slice %78 {offsets = [0, 384], sizes = [8, 128], strides = [1, 1]} : vector<8x512xf32> to vector<8x128xf32>
    %94 = arith.negf %93 : vector<8x128xf32>
    %95 = math.exp %94 : vector<8x128xf32>
    %cst_27 = arith.constant 1.000000e+00 : f32
    %96 = vector.broadcast %cst_27 : f32 to vector<8x128xf32>
    %97 = arith.addf %96, %95 : vector<8x128xf32>
    %98 = arith.divf %96, %97 : vector<8x128xf32>
    %99 = arith.mulf %90, %67 : vector<8x128xf32>
    %100 = arith.mulf %84, %92 : vector<8x128xf32>
    %101 = arith.addf %99, %100 : vector<8x128xf32>
    %102 = math.tanh %101 : vector<8x128xf32>
    %103 = arith.mulf %98, %102 : vector<8x128xf32>
    %104 = arith.index_cast %c2_i32 : i32 to index
    %c0_28 = arith.constant 0 : index
    %c0_29 = arith.constant 0 : index
    %105 = vector.load %arg4[%104, %c0_28, %c0_29] : memref<8x8x128xf32, #tpu.memory_space<vmem>>, vector<1x8x128xf32>
    %106 = vector.shape_cast %105 : vector<1x8x128xf32> to vector<8x128xf32>
    %107 = vector.shape_cast %103 : vector<8x128xf32> to vector<1x8x128xf32>
    tpu.vector_store %arg4[%104, %c0_28, %c0_29], %107 {strides = array<i32>} : memref<8x8x128xf32, #tpu.memory_space<vmem>>, vector<1x8x128xf32>,
    %c3_i32 = arith.constant 3 : i32
    %108 = arith.index_cast %c3_i32 : i32 to index
    %c0_30 = arith.constant 0 : index
    %c0_31 = arith.constant 0 : index
    %109 = vector.load %arg2[%108, %c0_30, %c0_31] : memref<8x8x512xf32, #tpu.memory_space<vmem>>, vector<1x8x512xf32>
    %110 = vector.shape_cast %109 : vector<1x8x512xf32> to vector<8x512xf32>
    %cst_32 = arith.constant dense<0.000000e+00> : vector<8x512xf32>
    %111 = tpu.matmul %103, %3, %cst_32 {dimension_numbers = #tpu.dot_dimension_numbers<[1], [0], [0], [1], [0, 0, 1, 1], [], []>} : vector<8x128xf32>, vector<128x512xf32>, vector<8x512xf32> -> vector<8x512xf32>
    %112 = arith.addf %110, %111 : vector<8x512xf32>
    %113 = vector.extract_strided_slice %112 {offsets = [0, 0], sizes = [8, 128], strides = [1, 1]} : vector<8x512xf32> to vector<8x128xf32>
    %114 = arith.negf %113 : vector<8x128xf32>
    %115 = math.exp %114 : vector<8x128xf32>
    %cst_33 = arith.constant 1.000000e+00 : f32
    %116 = vector.broadcast %cst_33 : f32 to vector<8x128xf32>
    %117 = arith.addf %116, %115 : vector<8x128xf32>
    %118 = arith.divf %116, %117 : vector<8x128xf32>
    %119 = vector.extract_strided_slice %112 {offsets = [0, 128], sizes = [8, 128], strides = [1, 1]} : vector<8x512xf32> to vector<8x128xf32>
    %120 = arith.negf %119 : vector<8x128xf32>
    %121 = math.exp %120 : vector<8x128xf32>
    %cst_34 = arith.constant 1.000000e+00 : f32
    %122 = vector.broadcast %cst_34 : f32 to vector<8x128xf32>
    %123 = arith.addf %122, %121 : vector<8x128xf32>
    %124 = arith.divf %122, %123 : vector<8x128xf32>
    %125 = vector.extract_strided_slice %112 {offsets = [0, 256], sizes = [8, 128], strides = [1, 1]} : vector<8x512xf32> to vector<8x128xf32>
    %126 = math.tanh %125 : vector<8x128xf32>
    %127 = vector.extract_strided_slice %112 {offsets = [0, 384], sizes = [8, 128], strides = [1, 1]} : vector<8x512xf32> to vector<8x128xf32>
    %128 = arith.negf %127 : vector<8x128xf32>
    %129 = math.exp %128 : vector<8x128xf32>
    %cst_35 = arith.constant 1.000000e+00 : f32
    %130 = vector.broadcast %cst_35 : f32 to vector<8x128xf32>
    %131 = arith.addf %130, %129 : vector<8x128xf32>
    %132 = arith.divf %130, %131 : vector<8x128xf32>
    %133 = arith.mulf %124, %101 : vector<8x128xf32>
    %134 = arith.mulf %118, %126 : vector<8x128xf32>
    %135 = arith.addf %133, %134 : vector<8x128xf32>
    %136 = math.tanh %135 : vector<8x128xf32>
    %137 = arith.mulf %132, %136 : vector<8x128xf32>
    %138 = arith.index_cast %c3_i32 : i32 to index
    %c0_36 = arith.constant 0 : index
    %c0_37 = arith.constant 0 : index
    %139 = vector.load %arg4[%138, %c0_36, %c0_37] : memref<8x8x128xf32, #tpu.memory_space<vmem>>, vector<1x8x128xf32>
    %140 = vector.shape_cast %139 : vector<1x8x128xf32> to vector<8x128xf32>
    %141 = vector.shape_cast %137 : vector<8x128xf32> to vector<1x8x128xf32>
    tpu.vector_store %arg4[%138, %c0_36, %c0_37], %141 {strides = array<i32>} : memref<8x8x128xf32, #tpu.memory_space<vmem>>, vector<1x8x128xf32>,
    %c4_i32 = arith.constant 4 : i32
    %142 = arith.index_cast %c4_i32 : i32 to index
    %c0_38 = arith.constant 0 : index
    %c0_39 = arith.constant 0 : index
    %143 = vector.load %arg2[%142, %c0_38, %c0_39] : memref<8x8x512xf32, #tpu.memory_space<vmem>>, vector<1x8x512xf32>
    %144 = vector.shape_cast %143 : vector<1x8x512xf32> to vector<8x512xf32>
    %cst_40 = arith.constant dense<0.000000e+00> : vector<8x512xf32>
    %145 = tpu.matmul %137, %3, %cst_40 {dimension_numbers = #tpu.dot_dimension_numbers<[1], [0], [0], [1], [0, 0, 1, 1], [], []>} : vector<8x128xf32>, vector<128x512xf32>, vector<8x512xf32> -> vector<8x512xf32>
    %146 = arith.addf %144, %145 : vector<8x512xf32>
    %147 = vector.extract_strided_slice %146 {offsets = [0, 0], sizes = [8, 128], strides = [1, 1]} : vector<8x512xf32> to vector<8x128xf32>
    %148 = arith.negf %147 : vector<8x128xf32>
    %149 = math.exp %148 : vector<8x128xf32>
    %cst_41 = arith.constant 1.000000e+00 : f32
    %150 = vector.broadcast %cst_41 : f32 to vector<8x128xf32>
    %151 = arith.addf %150, %149 : vector<8x128xf32>
    %152 = arith.divf %150, %151 : vector<8x128xf32>
    %153 = vector.extract_strided_slice %146 {offsets = [0, 128], sizes = [8, 128], strides = [1, 1]} : vector<8x512xf32> to vector<8x128xf32>
    %154 = arith.negf %153 : vector<8x128xf32>
    %155 = math.exp %154 : vector<8x128xf32>
    %cst_42 = arith.constant 1.000000e+00 : f32
    %156 = vector.broadcast %cst_42 : f32 to vector<8x128xf32>
    %157 = arith.addf %156, %155 : vector<8x128xf32>
    %158 = arith.divf %156, %157 : vector<8x128xf32>
    %159 = vector.extract_strided_slice %146 {offsets = [0, 256], sizes = [8, 128], strides = [1, 1]} : vector<8x512xf32> to vector<8x128xf32>
    %160 = math.tanh %159 : vector<8x128xf32>
    %161 = vector.extract_strided_slice %146 {offsets = [0, 384], sizes = [8, 128], strides = [1, 1]} : vector<8x512xf32> to vector<8x128xf32>
    %162 = arith.negf %161 : vector<8x128xf32>
    %163 = math.exp %162 : vector<8x128xf32>
    %cst_43 = arith.constant 1.000000e+00 : f32
    %164 = vector.broadcast %cst_43 : f32 to vector<8x128xf32>
    %165 = arith.addf %164, %163 : vector<8x128xf32>
    %166 = arith.divf %164, %165 : vector<8x128xf32>
    %167 = arith.mulf %158, %135 : vector<8x128xf32>
    %168 = arith.mulf %152, %160 : vector<8x128xf32>
    %169 = arith.addf %167, %168 : vector<8x128xf32>
    %170 = math.tanh %169 : vector<8x128xf32>
    %171 = arith.mulf %166, %170 : vector<8x128xf32>
    %172 = arith.index_cast %c4_i32 : i32 to index
    %c0_44 = arith.constant 0 : index
    %c0_45 = arith.constant 0 : index
    %173 = vector.load %arg4[%172, %c0_44, %c0_45] : memref<8x8x128xf32, #tpu.memory_space<vmem>>, vector<1x8x128xf32>
    %174 = vector.shape_cast %173 : vector<1x8x128xf32> to vector<8x128xf32>
    %175 = vector.shape_cast %171 : vector<8x128xf32> to vector<1x8x128xf32>
    tpu.vector_store %arg4[%172, %c0_44, %c0_45], %175 {strides = array<i32>} : memref<8x8x128xf32, #tpu.memory_space<vmem>>, vector<1x8x128xf32>,
    %c5_i32 = arith.constant 5 : i32
    %176 = arith.index_cast %c5_i32 : i32 to index
    %c0_46 = arith.constant 0 : index
    %c0_47 = arith.constant 0 : index
    %177 = vector.load %arg2[%176, %c0_46, %c0_47] : memref<8x8x512xf32, #tpu.memory_space<vmem>>, vector<1x8x512xf32>
    %178 = vector.shape_cast %177 : vector<1x8x512xf32> to vector<8x512xf32>
    %cst_48 = arith.constant dense<0.000000e+00> : vector<8x512xf32>
    %179 = tpu.matmul %171, %3, %cst_48 {dimension_numbers = #tpu.dot_dimension_numbers<[1], [0], [0], [1], [0, 0, 1, 1], [], []>} : vector<8x128xf32>, vector<128x512xf32>, vector<8x512xf32> -> vector<8x512xf32>
    %180 = arith.addf %178, %179 : vector<8x512xf32>
    %181 = vector.extract_strided_slice %180 {offsets = [0, 0], sizes = [8, 128], strides = [1, 1]} : vector<8x512xf32> to vector<8x128xf32>
    %182 = arith.negf %181 : vector<8x128xf32>
    %183 = math.exp %182 : vector<8x128xf32>
    %cst_49 = arith.constant 1.000000e+00 : f32
    %184 = vector.broadcast %cst_49 : f32 to vector<8x128xf32>
    %185 = arith.addf %184, %183 : vector<8x128xf32>
    %186 = arith.divf %184, %185 : vector<8x128xf32>
    %187 = vector.extract_strided_slice %180 {offsets = [0, 128], sizes = [8, 128], strides = [1, 1]} : vector<8x512xf32> to vector<8x128xf32>
    %188 = arith.negf %187 : vector<8x128xf32>
    %189 = math.exp %188 : vector<8x128xf32>
    %cst_50 = arith.constant 1.000000e+00 : f32
    %190 = vector.broadcast %cst_50 : f32 to vector<8x128xf32>
    %191 = arith.addf %190, %189 : vector<8x128xf32>
    %192 = arith.divf %190, %191 : vector<8x128xf32>
    %193 = vector.extract_strided_slice %180 {offsets = [0, 256], sizes = [8, 128], strides = [1, 1]} : vector<8x512xf32> to vector<8x128xf32>
    %194 = math.tanh %193 : vector<8x128xf32>
    %195 = vector.extract_strided_slice %180 {offsets = [0, 384], sizes = [8, 128], strides = [1, 1]} : vector<8x512xf32> to vector<8x128xf32>
    %196 = arith.negf %195 : vector<8x128xf32>
    %197 = math.exp %196 : vector<8x128xf32>
    %cst_51 = arith.constant 1.000000e+00 : f32
    %198 = vector.broadcast %cst_51 : f32 to vector<8x128xf32>
    %199 = arith.addf %198, %197 : vector<8x128xf32>
    %200 = arith.divf %198, %199 : vector<8x128xf32>
    %201 = arith.mulf %192, %169 : vector<8x128xf32>
    %202 = arith.mulf %186, %194 : vector<8x128xf32>
    %203 = arith.addf %201, %202 : vector<8x128xf32>
    %204 = math.tanh %203 : vector<8x128xf32>
    %205 = arith.mulf %200, %204 : vector<8x128xf32>
    %206 = arith.index_cast %c5_i32 : i32 to index
    %c0_52 = arith.constant 0 : index
    %c0_53 = arith.constant 0 : index
    %207 = vector.load %arg4[%206, %c0_52, %c0_53] : memref<8x8x128xf32, #tpu.memory_space<vmem>>, vector<1x8x128xf32>
    %208 = vector.shape_cast %207 : vector<1x8x128xf32> to vector<8x128xf32>
    %209 = vector.shape_cast %205 : vector<8x128xf32> to vector<1x8x128xf32>
    tpu.vector_store %arg4[%206, %c0_52, %c0_53], %209 {strides = array<i32>} : memref<8x8x128xf32, #tpu.memory_space<vmem>>, vector<1x8x128xf32>,
    %c6_i32 = arith.constant 6 : i32
    %210 = arith.index_cast %c6_i32 : i32 to index
    %c0_54 = arith.constant 0 : index
    %c0_55 = arith.constant 0 : index
    %211 = vector.load %arg2[%210, %c0_54, %c0_55] : memref<8x8x512xf32, #tpu.memory_space<vmem>>, vector<1x8x512xf32>
    %212 = vector.shape_cast %211 : vector<1x8x512xf32> to vector<8x512xf32>
    %cst_56 = arith.constant dense<0.000000e+00> : vector<8x512xf32>
    %213 = tpu.matmul %205, %3, %cst_56 {dimension_numbers = #tpu.dot_dimension_numbers<[1], [0], [0], [1], [0, 0, 1, 1], [], []>} : vector<8x128xf32>, vector<128x512xf32>, vector<8x512xf32> -> vector<8x512xf32>
    %214 = arith.addf %212, %213 : vector<8x512xf32>
    %215 = vector.extract_strided_slice %214 {offsets = [0, 0], sizes = [8, 128], strides = [1, 1]} : vector<8x512xf32> to vector<8x128xf32>
    %216 = arith.negf %215 : vector<8x128xf32>
    %217 = math.exp %216 : vector<8x128xf32>
    %cst_57 = arith.constant 1.000000e+00 : f32
    %218 = vector.broadcast %cst_57 : f32 to vector<8x128xf32>
    %219 = arith.addf %218, %217 : vector<8x128xf32>
    %220 = arith.divf %218, %219 : vector<8x128xf32>
    %221 = vector.extract_strided_slice %214 {offsets = [0, 128], sizes = [8, 128], strides = [1, 1]} : vector<8x512xf32> to vector<8x128xf32>
    %222 = arith.negf %221 : vector<8x128xf32>
    %223 = math.exp %222 : vector<8x128xf32>
    %cst_58 = arith.constant 1.000000e+00 : f32
    %224 = vector.broadcast %cst_58 : f32 to vector<8x128xf32>
    %225 = arith.addf %224, %223 : vector<8x128xf32>
    %226 = arith.divf %224, %225 : vector<8x128xf32>
    %227 = vector.extract_strided_slice %214 {offsets = [0, 256], sizes = [8, 128], strides = [1, 1]} : vector<8x512xf32> to vector<8x128xf32>
    %228 = math.tanh %227 : vector<8x128xf32>
    %229 = vector.extract_strided_slice %214 {offsets = [0, 384], sizes = [8, 128], strides = [1, 1]} : vector<8x512xf32> to vector<8x128xf32>
    %230 = arith.negf %229 : vector<8x128xf32>
    %231 = math.exp %230 : vector<8x128xf32>
    %cst_59 = arith.constant 1.000000e+00 : f32
    %232 = vector.broadcast %cst_59 : f32 to vector<8x128xf32>
    %233 = arith.addf %232, %231 : vector<8x128xf32>
    %234 = arith.divf %232, %233 : vector<8x128xf32>
    %235 = arith.mulf %226, %203 : vector<8x128xf32>
    %236 = arith.mulf %220, %228 : vector<8x128xf32>
    %237 = arith.addf %235, %236 : vector<8x128xf32>
    %238 = math.tanh %237 : vector<8x128xf32>
    %239 = arith.mulf %234, %238 : vector<8x128xf32>
    %240 = arith.index_cast %c6_i32 : i32 to index
    %c0_60 = arith.constant 0 : index
    %c0_61 = arith.constant 0 : index
    %241 = vector.load %arg4[%240, %c0_60, %c0_61] : memref<8x8x128xf32, #tpu.memory_space<vmem>>, vector<1x8x128xf32>
    %242 = vector.shape_cast %241 : vector<1x8x128xf32> to vector<8x128xf32>
    %243 = vector.shape_cast %239 : vector<8x128xf32> to vector<1x8x128xf32>
    tpu.vector_store %arg4[%240, %c0_60, %c0_61], %243 {strides = array<i32>} : memref<8x8x128xf32, #tpu.memory_space<vmem>>, vector<1x8x128xf32>,
    %c7_i32 = arith.constant 7 : i32
    %244 = arith.index_cast %c7_i32 : i32 to index
    %c0_62 = arith.constant 0 : index
    %c0_63 = arith.constant 0 : index
    %245 = vector.load %arg2[%244, %c0_62, %c0_63] : memref<8x8x512xf32, #tpu.memory_space<vmem>>, vector<1x8x512xf32>
    %246 = vector.shape_cast %245 : vector<1x8x512xf32> to vector<8x512xf32>
    %cst_64 = arith.constant dense<0.000000e+00> : vector<8x512xf32>
    %247 = tpu.matmul %239, %3, %cst_64 {dimension_numbers = #tpu.dot_dimension_numbers<[1], [0], [0], [1], [0, 0, 1, 1], [], []>} : vector<8x128xf32>, vector<128x512xf32>, vector<8x512xf32> -> vector<8x512xf32>
    %248 = arith.addf %246, %247 : vector<8x512xf32>
    %249 = vector.extract_strided_slice %248 {offsets = [0, 0], sizes = [8, 128], strides = [1, 1]} : vector<8x512xf32> to vector<8x128xf32>
    %250 = arith.negf %249 : vector<8x128xf32>
    %251 = math.exp %250 : vector<8x128xf32>
    %cst_65 = arith.constant 1.000000e+00 : f32
    %252 = vector.broadcast %cst_65 : f32 to vector<8x128xf32>
    %253 = arith.addf %252, %251 : vector<8x128xf32>
    %254 = arith.divf %252, %253 : vector<8x128xf32>
    %255 = vector.extract_strided_slice %248 {offsets = [0, 128], sizes = [8, 128], strides = [1, 1]} : vector<8x512xf32> to vector<8x128xf32>
    %256 = arith.negf %255 : vector<8x128xf32>
    %257 = math.exp %256 : vector<8x128xf32>
    %cst_66 = arith.constant 1.000000e+00 : f32
    %258 = vector.broadcast %cst_66 : f32 to vector<8x128xf32>
    %259 = arith.addf %258, %257 : vector<8x128xf32>
    %260 = arith.divf %258, %259 : vector<8x128xf32>
    %261 = vector.extract_strided_slice %248 {offsets = [0, 256], sizes = [8, 128], strides = [1, 1]} : vector<8x512xf32> to vector<8x128xf32>
    %262 = math.tanh %261 : vector<8x128xf32>
    %263 = vector.extract_strided_slice %248 {offsets = [0, 384], sizes = [8, 128], strides = [1, 1]} : vector<8x512xf32> to vector<8x128xf32>
    %264 = arith.negf %263 : vector<8x128xf32>
    %265 = math.exp %264 : vector<8x128xf32>
    %cst_67 = arith.constant 1.000000e+00 : f32
    %266 = vector.broadcast %cst_67 : f32 to vector<8x128xf32>
    %267 = arith.addf %266, %265 : vector<8x128xf32>
    %268 = arith.divf %266, %267 : vector<8x128xf32>
    %269 = arith.mulf %260, %237 : vector<8x128xf32>
    %270 = arith.mulf %254, %262 : vector<8x128xf32>
    %271 = arith.addf %269, %270 : vector<8x128xf32>
    %272 = math.tanh %271 : vector<8x128xf32>
    %273 = arith.mulf %268, %272 : vector<8x128xf32>
    %274 = arith.index_cast %c7_i32 : i32 to index
    %c0_68 = arith.constant 0 : index
    %c0_69 = arith.constant 0 : index
    %275 = vector.load %arg4[%274, %c0_68, %c0_69] : memref<8x8x128xf32, #tpu.memory_space<vmem>>, vector<1x8x128xf32>
    %276 = vector.shape_cast %275 : vector<1x8x128xf32> to vector<8x128xf32>
    %277 = vector.shape_cast %273 : vector<8x128xf32> to vector<1x8x128xf32>
    tpu.vector_store %arg4[%274, %c0_68, %c0_69], %277 {strides = array<i32>} : memref<8x8x128xf32, #tpu.memory_space<vmem>>, vector<1x8x128xf32>,
    %c8_i32 = arith.constant 8 : i32
    %c0_70 = arith.constant 0 : index
    %c0_71 = arith.constant 0 : index
    %278 = vector.load %arg5[%c0_70, %c0_71] : memref<8x128xf32, #tpu.memory_space<vmem>>, vector<8x128xf32>
    tpu.vector_store %arg5[%c0_70, %c0_71], %273 {strides = array<i32>} : memref<8x128xf32, #tpu.memory_space<vmem>>, vector<8x128xf32>,
    %c0_72 = arith.constant 0 : index
    %c0_73 = arith.constant 0 : index
    %279 = vector.load %arg6[%c0_72, %c0_73] : memref<8x128xf32, #tpu.memory_space<vmem>>, vector<8x128xf32>
    tpu.vector_store %arg6[%c0_72, %c0_73], %271 {strides = array<i32>} : memref<8x128xf32, #tpu.memory_space<vmem>>, vector<8x128xf32>,
    return
  }
  func.func @transform_0(%arg0: i32, %arg1: i32) -> (i32, i32, i32) {
    %c0_i32 = arith.constant 0 : i32
    %c0_i32_0 = arith.constant 0 : i32
    return %arg1, %arg0, %c0_i32 : i32, i32, i32
  }
  func.func @transform_1(%arg0: i32, %arg1: i32) -> (i32, i32) {
    %c0_i32 = arith.constant 0 : i32
    %c0_i32_0 = arith.constant 0 : i32
    %c0_i32_1 = arith.constant 0 : i32
    return %c0_i32, %c0_i32_0 : i32, i32
  }
  func.func @transform_2(%arg0: i32, %arg1: i32) -> (i32, i32, i32) {
    %c0_i32 = arith.constant 0 : i32
    %c0_i32_0 = arith.constant 0 : i32
    return %arg1, %arg0, %c0_i32 : i32, i32, i32
  }
}

</mosaic_0001>

<llo_original>
// kernel: tpu_custom_call.1
$region0: #{tpu_custom_call.1}
  #allocation0 [shape = 'u32[]', space=smem, size = 0x4, offset = 0x4, fixed_abs, tag = 'smem constant byte address 0x4 - core index']
  #allocation1 [shape = 'u32[144,128]{1,0:T(1,128)}', space=vmem, size = 0x12000, scoped, tag = 'internal scratch']
  #allocation2 [shape = 'f32[8,128]{1,0:T(8,128)}', space=vmem, size = 0x1000, scoped, tag = 'scratch operand']
  #allocation3 [shape = 'f32[8,128]{1,0:T(8,128)}', space=vmem, size = 0x1000, scoped, tag = 'scratch operand']
  %s0 = inlined_call_operand.hbm [shape: f32[8,8,512], index: 0, kind: input, shape index: {}]
  %s1 = inlined_call_operand.hbm [shape: f32[128,512], index: 1, kind: input, shape index: {}]
  %s2 = inlined_call_operand.hbm [shape: f32[8,8,128], index: 2, kind: output, shape index: {}]
  %s3 = sld [smem:[#allocation0]]
  $region30: #{tpu_custom_call.1} parent=0
    _
  %s5 = ssub.s32 1, %s3
  %s6 = scalar_select 0, %s5, %s3
  $region1: #{tpu_custom_call.1} parent=0
    #allocation4 [shape = 'u8[131072]{0}', space=vmem, size = 0x20000, scoped, tag = 'input window, operand 0, single buffered']
    #allocation5 [shape = 's32[1]{0}', space=sflag, size = 0x4, scoped, tag = 'scoped memory for tpu_custom_call.1']
    #allocation6 [shape = 's32[1]{0}', space=sflag, size = 0x4, scoped, tag = 'scoped memory for tpu_custom_call.1']
    #allocation7 [shape = 'u8[262144]{0}', space=vmem, size = 0x40000, scoped, tag = 'input window, operand 1, single buffered']
    #allocation8 [shape = 's32[1]{0}', space=sflag, size = 0x4, scoped, tag = 'scoped memory for tpu_custom_call.1']
    #allocation9 [shape = 'u8[32768]{0}', space=vmem, size = 0x8000, scoped, tag = 'output window, operand 0, single buffered']
    %7 = vsyncpa [#allocation5], 0
    %8 = vsyncpa [#allocation8], 0
    %9 = vsyncpa [#allocation6], 0
    // Predicated region
    $region2: #{tpu_custom_call.1} parent=1 // pred_check
      _
    $region3: #{tpu_custom_call.1} parent=1 // pred_check_branch
      %11 = sbr.rel (0) target = $region5
    $region4: #{tpu_custom_call.1} parent=1 // pred_region
      %s13 = ssub.s32 4096, 4096
      %14 = vsyncadd [#allocation5], %s13
      %s15 = sshll.u32 [#allocation4], 4
      %s16 = int_to_ptr.vmem [resolvable:$true] %s15
      %21 = dma.hbm_to_vmem [thread:$0]  %s0, 4096, %s16, [#allocation5], 512, 512, 32
    $region5: #{tpu_custom_call.1} parent=1 // pred_fallthru
      _
    // Predicated region
    $region6: #{tpu_custom_call.1} parent=1 // pred_check
      _
    $region7: #{tpu_custom_call.1} parent=1 // pred_check_branch
      %23 = sbr.rel (0) target = $region9
    $region8: #{tpu_custom_call.1} parent=1 // pred_region
      %s25 = ssub.s32 8192, 8192
      %26 = vsyncadd [#allocation8], %s25
      %s27 = sshll.u32 [#allocation7], 4
      %s28 = int_to_ptr.vmem [resolvable:$true] %s27
      %33 = dma.hbm_to_vmem [thread:$0]  %s1, 8192, %s28, [#allocation8], 512, 512, 32
    $region9: #{tpu_custom_call.1} parent=1 // pred_fallthru
      _
    // Predicated region
    $region10: #{tpu_custom_call.1} parent=1 // pred_check
      _
    $region11: #{tpu_custom_call.1} parent=1 // pred_check_branch
      %35 = sbr.rel (0) target = $region13
    $region12: #{tpu_custom_call.1} parent=1 // pred_region
      %36 = dma.done [#allocation5], 4096
    $region13: #{tpu_custom_call.1} parent=1 // pred_fallthru
      _
    // Predicated region
    $region14: #{tpu_custom_call.1} parent=1 // pred_check
      _
    $region15: #{tpu_custom_call.1} parent=1 // pred_check_branch
      %38 = sbr.rel (0) target = $region17
    $region16: #{tpu_custom_call.1} parent=1 // pred_region
      %39 = dma.done [#allocation8], 8192
    $region17: #{tpu_custom_call.1} parent=1 // pred_fallthru
      _
    %p40 = scmp.eq.s32.totalorder 0, 0
    // Predicated region
    $region18: #{tpu_custom_call.1} parent=1 // pred_check
      %p41 = pneg %p40
    $region19: #{tpu_custom_call.1} parent=1 // pred_check_branch
      %43 = sbr.rel (%p41) target = $region21
    $region20: #{tpu_custom_call.1} parent=1 // pred_region
      %44 = vst [vmem:[#allocation2] sm:$0xff] 0.0
      %45 = vst [vmem:[#allocation3] sm:$0xff] 0.0
    $region21: #{tpu_custom_call.1} parent=1 // pred_fallthru
      _
    %v46 = vld [vmem:[#allocation7] sm:$0xff]
    %v47 = vld [vmem:[#allocation7 + $0x8] sm:$0xff]
    %v48 = vld [vmem:[#allocation7 + $0x10] sm:$0xff]
    %v49 = vld [vmem:[#allocation7 + $0x18] sm:$0xff]
    %v50 = vld [vmem:[#allocation7 + $0x20] sm:$0xff]
    %v51 = vld [vmem:[#allocation7 + $0x28] sm:$0xff]
    %v52 = vld [vmem:[#allocation7 + $0x30] sm:$0xff]
    %v53 = vld [vmem:[#allocation7 + $0x38] sm:$0xff]
    %v54 = vld [vmem:[#allocation7 + $0x40] sm:$0xff]
    %v55 = vld [vmem:[#allocation7 + $0x48] sm:$0xff]
    %v56 = vld [vmem:[#allocation7 + $0x50] sm:$0xff]
    %v57 = vld [vmem:[#allocation7 + $0x58] sm:$0xff]
    %v58 = vld [vmem:[#allocation7 + $0x60] sm:$0xff]
    %v59 = vld [vmem:[#allocation7 + $0x68] sm:$0xff]
    %v60 = vld [vmem:[#allocation7 + $0x70] sm:$0xff]
    %v61 = vld [vmem:[#allocation7 + $0x78] sm:$0xff]
    %v62 = vld [vmem:[#allocation7 + $0x80] sm:$0xff]
    %v63 = vld [vmem:[#allocation7 + $0x88] sm:$0xff]
    %v64 = vld [vmem:[#allocation7 + $0x90] sm:$0xff]
    %v65 = vld [vmem:[#allocation7 + $0x98] sm:$0xff]
    %v66 = vld [vmem:[#allocation7 + $0xa0] sm:$0xff]
    %v67 = vld [vmem:[#allocation7 + $0xa8] sm:$0xff]
    %v68 = vld [vmem:[#allocation7 + $0xb0] sm:$0xff]
    %v69 = vld [vmem:[#allocation7 + $0xb8] sm:$0xff]
    %v70 = vld [vmem:[#allocation7 + $0xc0] sm:$0xff]
    %v71 = vld [vmem:[#allocation7 + $0xc8] sm:$0xff]
    %v72 = vld [vmem:[#allocation7 + $0xd0] sm:$0xff]
    %v73 = vld [vmem:[#allocation7 + $0xd8] sm:$0xff]
    %v74 = vld [vmem:[#allocation7 + $0xe0] sm:$0xff]
    %v75 = vld [vmem:[#allocation7 + $0xe8] sm:$0xff]
    %v76 = vld [vmem:[#allocation7 + $0xf0] sm:$0xff]
    %v77 = vld [vmem:[#allocation7 + $0xf8] sm:$0xff]
    %v78 = vld [vmem:[#allocation7 + $0x100] sm:$0xff]
    %v79 = vld [vmem:[#allocation7 + $0x108] sm:$0xff]
    %v80 = vld [vmem:[#allocation7 + $0x110] sm:$0xff]
    %v81 = vld [vmem:[#allocation7 + $0x118] sm:$0xff]
    %v82 = vld [vmem:[#allocation7 + $0x120] sm:$0xff]
    %v83 = vld [vmem:[#allocation7 + $0x128] sm:$0xff]
    %v84 = vld [vmem:[#allocation7 + $0x130] sm:$0xff]
    %v85 = vld [vmem:[#allocation7 + $0x138] sm:$0xff]
    %v86 = vld [vmem:[#allocation7 + $0x140] sm:$0xff]
    %v87 = vld [vmem:[#allocation7 + $0x148] sm:$0xff]
    %v88 = vld [vmem:[#allocation7 + $0x150] sm:$0xff]
    %v89 = vld [vmem:[#allocation7 + $0x158] sm:$0xff]
    %v90 = vld [vmem:[#allocation7 + $0x160] sm:$0xff]
    %v91 = vld [vmem:[#allocation7 + $0x168] sm:$0xff]
    %v92 = vld [vmem:[#allocation7 + $0x170] sm:$0xff]
    %v93 = vld [vmem:[#allocation7 + $0x178] sm:$0xff]
    %v94 = vld [vmem:[#allocation7 + $0x180] sm:$0xff]
    %v95 = vld [vmem:[#allocation7 + $0x188] sm:$0xff]
    %v96 = vld [vmem:[#allocation7 + $0x190] sm:$0xff]
    %v97 = vld [vmem:[#allocation7 + $0x198] sm:$0xff]
    %v98 = vld [vmem:[#allocation7 + $0x1a0] sm:$0xff]
    %v99 = vld [vmem:[#allocation7 + $0x1a8] sm:$0xff]
    %v100 = vld [vmem:[#allocation7 + $0x1b0] sm:$0xff]
    %v101 = vld [vmem:[#allocation7 + $0x1b8] sm:$0xff]
    %v102 = vld [vmem:[#allocation7 + $0x1c0] sm:$0xff]
    %v103 = vld [vmem:[#allocation7 + $0x1c8] sm:$0xff]
    %v104 = vld [vmem:[#allocation7 + $0x1d0] sm:$0xff]
    %v105 = vld [vmem:[#allocation7 + $0x1d8] sm:$0xff]
    %v106 = vld [vmem:[#allocation7 + $0x1e0] sm:$0xff]
    %v107 = vld [vmem:[#allocation7 + $0x1e8] sm:$0xff]
    %v108 = vld [vmem:[#allocation7 + $0x1f0] sm:$0xff]
    %v109 = vld [vmem:[#allocation7 + $0x1f8] sm:$0xff]
    %v110 = vld [vmem:[#allocation2] sm:$0xff]
    %v111 = vld [vmem:[#allocation3] sm:$0xff]
    %v112 = vld [vmem:[#allocation4] sm:$0xff]
    %v113 = vld [vmem:[#allocation4 + $0x8] sm:$0xff]
    %v114 = vld [vmem:[#allocation4 + $0x10] sm:$0xff]
    %v115 = vld [vmem:[#allocation4 + $0x18] sm:$0xff]
    %116 = vmatprep.subr.mxu0 %v47
    %117 = vmatpush1.msra.mxu0 %v46
    %118 = vmatprep.subr.mxu0 %v51
    %119 = vmatpush1.msra.mxu0 %v50
    %120 = vmatprep.subr.mxu0 %v55
    %121 = vmatpush1.msra.mxu0 %v54
    %122 = vmatprep.subr.mxu0 %v59
    %123 = vmatpush1.msra.mxu0 %v58
    %124 = vmatprep.subr.mxu0 %v63
    %125 = vmatpush1.msra.mxu0 %v62
    %126 = vmatprep.subr.mxu0 %v67
    %127 = vmatpush1.msra.mxu0 %v66
    %128 = vmatprep.subr.mxu0 %v71
    %129 = vmatpush1.msra.mxu0 %v70
    %130 = vmatprep.subr.mxu0 %v75
    %131 = vmatpush1.msra.mxu0 %v74
    %132 = vmatprep.subr.mxu0 %v79
    %133 = vmatpush1.msra.mxu0 %v78
    %134 = vmatprep.subr.mxu0 %v83
    %135 = vmatpush1.msra.mxu0 %v82
    %136 = vmatprep.subr.mxu0 %v87
    %137 = vmatpush1.msra.mxu0 %v86
    %138 = vmatprep.subr.mxu0 %v91
    %139 = vmatpush1.msra.mxu0 %v90
    %140 = vmatprep.subr.mxu0 %v95
    %141 = vmatpush1.msra.mxu0 %v94
    %142 = vmatprep.subr.mxu0 %v99
    %143 = vmatpush1.msra.mxu0 %v98
    %144 = vmatprep.subr.mxu0 %v103
    %145 = vmatpush1.msra.mxu0 %v102
    %146 = vmatprep.subr.mxu0 %v107
    %147 = vmatpush1.msra.mxu0 %v106
    %148 = vmatprep.subr.mxu0 0.0
    %149 = vmatpush1.msra.mxu0 0.0
    %150 = vmatprep.subr.mxu0 0.0
    %151 = vmatpush1.msra.mxu0 0.0
    %152 = vmatprep.subr.mxu0 0.0
    %153 = vmatpush1.msra.mxu0 0.0
    %154 = vmatprep.subr.mxu0 0.0
    %155 = vmatpush1.msra.mxu0 0.0
    %156 = vmatprep.subr.mxu0 0.0
    %157 = vmatpush1.msra.mxu0 0.0
    %158 = vmatprep.subr.mxu0 0.0
    %159 = vmatpush1.msra.mxu0 0.0
    %160 = vmatprep.subr.mxu0 0.0
    %161 = vmatpush1.msra.mxu0 0.0
    %162 = vmatprep.subr.mxu0 0.0
    %163 = vmatpush1.msra.mxu0 0.0
    %164 = vmatprep.subr.mxu0 0.0
    %165 = vmatpush1.msra.mxu0 0.0
    %166 = vmatprep.subr.mxu0 0.0
    %167 = vmatpush1.msra.mxu0 0.0
    %168 = vmatprep.subr.mxu0 0.0
    %169 = vmatpush1.msra.mxu0 0.0
    %170 = vmatprep.subr.mxu0 0.0
    %171 = vmatpush1.msra.mxu0 0.0
    %172 = vmatprep.subr.mxu0 0.0
    %173 = vmatpush1.msra.mxu0 0.0
    %174 = vmatprep.subr.mxu0 0.0
    %175 = vmatpush1.msra.mxu0 0.0
    %176 = vmatprep.subr.mxu0 0.0
    %177 = vmatpush1.msra.mxu0 0.0
    %178 = vmatprep.subr.mxu0 0.0
    %179 = vmatpush1.msra.mxu0 0.0
    %180 = vmatprep.mubr.f32.mxu0 0.0
    %181 = vmatmul.mubr.f32.gmra.mrb[0].mxu0 %v110
    %v182 = vpop.f32.mrb[0].mxu0
    %v183 = vadd.f32 0.0, %v182
    %v184 = vpop.f32.mrb[0].mxu0
    %v185 = vadd.f32 0.0, %v184
    %186 = vdwg.mxu0
    %187 = vmatprep.subr.mxu0 %v49
    %188 = vmatpush1.msra.mxu0 %v48
    %189 = vmatprep.subr.mxu0 %v53
    %190 = vmatpush1.msra.mxu0 %v52
    %191 = vmatprep.subr.mxu0 %v57
    %192 = vmatpush1.msra.mxu0 %v56
    %193 = vmatprep.subr.mxu0 %v61
    %194 = vmatpush1.msra.mxu0 %v60
    %195 = vmatprep.subr.mxu0 %v65
    %196 = vmatpush1.msra.mxu0 %v64
    %197 = vmatprep.subr.mxu0 %v69
    %198 = vmatpush1.msra.mxu0 %v68
    %199 = vmatprep.subr.mxu0 %v73
    %200 = vmatpush1.msra.mxu0 %v72
    %201 = vmatprep.subr.mxu0 %v77
    %202 = vmatpush1.msra.mxu0 %v76
    %203 = vmatprep.subr.mxu0 %v81
    %204 = vmatpush1.msra.mxu0 %v80
    %205 = vmatprep.subr.mxu0 %v85
    %206 = vmatpush1.msra.mxu0 %v84
    %207 = vmatprep.subr.mxu0 %v89
    %208 = vmatpush1.msra.mxu0 %v88
    %209 = vmatprep.subr.mxu0 %v93
    %210 = vmatpush1.msra.mxu0 %v92
    %211 = vmatprep.subr.mxu0 %v97
    %212 = vmatpush1.msra.mxu0 %v96
    %213 = vmatprep.subr.mxu0 %v101
    %214 = vmatpush1.msra.mxu0 %v100
    %215 = vmatprep.subr.mxu0 %v105
    %216 = vmatpush1.msra.mxu0 %v104
    %217 = vmatprep.subr.mxu0 %v109
    %218 = vmatpush1.msra.mxu0 %v108
    %219 = vmatprep.subr.mxu0 0.0
    %220 = vmatpush1.msra.mxu0 0.0
    %221 = vmatprep.subr.mxu0 0.0
    %222 = vmatpush1.msra.mxu0 0.0
    %223 = vmatprep.subr.mxu0 0.0
    %224 = vmatpush1.msra.mxu0 0.0
    %225 = vmatprep.subr.mxu0 0.0
    %226 = vmatpush1.msra.mxu0 0.0
    %227 = vmatprep.subr.mxu0 0.0
    %228 = vmatpush1.msra.mxu0 0.0
    %229 = vmatprep.subr.mxu0 0.0
    %230 = vmatpush1.msra.mxu0 0.0
    %231 = vmatprep.subr.mxu0 0.0
    %232 = vmatpush1.msra.mxu0 0.0
    %233 = vmatprep.subr.mxu0 0.0
    %234 = vmatpush1.msra.mxu0 0.0
    %235 = vmatprep.subr.mxu0 0.0
    %236 = vmatpush1.msra.mxu0 0.0
    %237 = vmatprep.subr.mxu0 0.0
    %238 = vmatpush1.msra.mxu0 0.0
    %239 = vmatprep.subr.mxu0 0.0
    %240 = vmatpush1.msra.mxu0 0.0
    %241 = vmatprep.subr.mxu0 0.0
    %242 = vmatpush1.msra.mxu0 0.0
    %243 = vmatprep.subr.mxu0 0.0
    %244 = vmatpush1.msra.mxu0 0.0
    %245 = vmatprep.subr.mxu0 0.0
    %246 = vmatpush1.msra.mxu0 0.0
    %247 = vmatprep.subr.mxu0 0.0
    %248 = vmatpush1.msra.mxu0 0.0
    %249 = vmatprep.subr.mxu0 0.0
    %250 = vmatpush1.msra.mxu0 0.0
    %251 = vmatprep.mubr.f32.mxu0 0.0
    %252 = vmatmul.mubr.f32.gmra.mrb[0].mxu0 %v110
    %v253 = vpop.f32.mrb[0].mxu0
    %v254 = vadd.f32 0.0, %v253
    %v255 = vpop.f32.mrb[0].mxu0
    %v256 = vadd.f32 0.0, %v255
    %257 = vdwg.mxu0
    %v258 = vadd.f32 %v112, %v183
    %v259 = vadd.f32 %v113, %v185
    %v260 = vadd.f32 %v114, %v254
    %v261 = vadd.f32 %v115, %v256
    %v262 = vxor.u32 %v258, 2147483648
    %v263 = vmul.f32 %v262, 1.442695
    %v264 = vpow.pop %v263
    %v265 = vadd.f32 %v264, 1.0
    %v266 = vrcp.pop %v265
    %v267 = vmul.f32 1.0, %v266
    %v268 = vxor.u32 %v259, 2147483648
    %v269 = vmul.f32 %v268, 1.442695
    %v270 = vpow.pop %v269
    %v271 = vadd.f32 %v270, 1.0
    %v272 = vrcp.pop %v271
    %v273 = vmul.f32 1.0, %v272
    %v274 = vtanh.pop %v260
    %v275 = vxor.u32 %v261, 2147483648
    %v276 = vmul.f32 %v275, 1.442695
    %v277 = vpow.pop %v276
    %v278 = vadd.f32 %v277, 1.0
    %v279 = vrcp.pop %v278
    %v280 = vmul.f32 1.0, %v279
    %v281 = vmul.f32 %v273, %v111
    %v282 = vmul.f32 %v267, %v274
    %v283 = vadd.f32 %v281, %v282
    %v284 = vtanh.pop %v283
    %v285 = vmul.f32 %v280, %v284
    %286 = vst [vmem:[#allocation9] sm:$0xff] %v285
    %s287 = scalar_lea.vmem [#allocation4], 32
    %v288 = vld [vmem:[%s287] sm:$0xff]
    %v289 = vld [vmem:[%s287 + $0x8] sm:$0xff]
    %v290 = vld [vmem:[%s287 + $0x10] sm:$0xff]
    %v291 = vld [vmem:[%s287 + $0x18] sm:$0xff]
    %292 = vmatprep.subr.mxu0 %v47
    %293 = vmatpush1.msra.mxu0 %v46
    %294 = vmatprep.subr.mxu0 %v51
    %295 = vmatpush1.msra.mxu0 %v50
    %296 = vmatprep.subr.mxu0 %v55
    %297 = vmatpush1.msra.mxu0 %v54
    %298 = vmatprep.subr.mxu0 %v59
    %299 = vmatpush1.msra.mxu0 %v58
    %300 = vmatprep.subr.mxu0 %v63
    %301 = vmatpush1.msra.mxu0 %v62
    %302 = vmatprep.subr.mxu0 %v67
    %303 = vmatpush1.msra.mxu0 %v66
    %304 = vmatprep.subr.mxu0 %v71
    %305 = vmatpush1.msra.mxu0 %v70
    %306 = vmatprep.subr.mxu0 %v75
    %307 = vmatpush1.msra.mxu0 %v74
    %308 = vmatprep.subr.mxu0 %v79
    %309 = vmatpush1.msra.mxu0 %v78
    %310 = vmatprep.subr.mxu0 %v83
    %311 = vmatpush1.msra.mxu0 %v82
    %312 = vmatprep.subr.mxu0 %v87
    %313 = vmatpush1.msra.mxu0 %v86
    %314 = vmatprep.subr.mxu0 %v91
    %315 = vmatpush1.msra.mxu0 %v90
    %316 = vmatprep.subr.mxu0 %v95
    %317 = vmatpush1.msra.mxu0 %v94
    %318 = vmatprep.subr.mxu0 %v99
    %319 = vmatpush1.msra.mxu0 %v98
    %320 = vmatprep.subr.mxu0 %v103
    %321 = vmatpush1.msra.mxu0 %v102
    %322 = vmatprep.subr.mxu0 %v107
    %323 = vmatpush1.msra.mxu0 %v106
    %324 = vmatprep.subr.mxu0 0.0
    %325 = vmatpush1.msra.mxu0 0.0
    %326 = vmatprep.subr.mxu0 0.0
    %327 = vmatpush1.msra.mxu0 0.0
    %328 = vmatprep.subr.mxu0 0.0
    %329 = vmatpush1.msra.mxu0 0.0
    %330 = vmatprep.subr.mxu0 0.0
    %331 = vmatpush1.msra.mxu0 0.0
    %332 = vmatprep.subr.mxu0 0.0
    %333 = vmatpush1.msra.mxu0 0.0
    %334 = vmatprep.subr.mxu0 0.0
    %335 = vmatpush1.msra.mxu0 0.0
    %336 = vmatprep.subr.mxu0 0.0
    %337 = vmatpush1.msra.mxu0 0.0
    %338 = vmatprep.subr.mxu0 0.0
    %339 = vmatpush1.msra.mxu0 0.0
    %340 = vmatprep.subr.mxu0 0.0
    %341 = vmatpush1.msra.mxu0 0.0
    %342 = vmatprep.subr.mxu0 0.0
    %343 = vmatpush1.msra.mxu0 0.0
    %344 = vmatprep.subr.mxu0 0.0
    %345 = vmatpush1.msra.mxu0 0.0
    %346 = vmatprep.subr.mxu0 0.0
    %347 = vmatpush1.msra.mxu0 0.0
    %348 = vmatprep.subr.mxu0 0.0
    %349 = vmatpush1.msra.mxu0 0.0
    %350 = vmatprep.subr.mxu0 0.0
    %351 = vmatpush1.msra.mxu0 0.0
    %352 = vmatprep.subr.mxu0 0.0
    %353 = vmatpush1.msra.mxu0 0.0
    %354 = vmatprep.subr.mxu0 0.0
    %355 = vmatpush1.msra.mxu0 0.0
    %356 = vmatprep.mubr.f32.mxu0 0.0
    %357 = vmatmul.mubr.f32.gmra.mrb[0].mxu0 %v285
    %v358 = vpop.f32.mrb[0].mxu0
    %v359 = vadd.f32 0.0, %v358
    %v360 = vpop.f32.mrb[0].mxu0
    %v361 = vadd.f32 0.0, %v360
    %362 = vdwg.mxu0
    %363 = vmatprep.subr.mxu0 %v49
    %364 = vmatpush1.msra.mxu0 %v48
    %365 = vmatprep.subr.mxu0 %v53
    %366 = vmatpush1.msra.mxu0 %v52
    %367 = vmatprep.subr.mxu0 %v57
    %368 = vmatpush1.msra.mxu0 %v56
    %369 = vmatprep.subr.mxu0 %v61
    %370 = vmatpush1.msra.mxu0 %v60
    %371 = vmatprep.subr.mxu0 %v65
    %372 = vmatpush1.msra.mxu0 %v64
    %373 = vmatprep.subr.mxu0 %v69
    %374 = vmatpush1.msra.mxu0 %v68
    %375 = vmatprep.subr.mxu0 %v73
    %376 = vmatpush1.msra.mxu0 %v72
    %377 = vmatprep.subr.mxu0 %v77
    %378 = vmatpush1.msra.mxu0 %v76
    %379 = vmatprep.subr.mxu0 %v81
    %380 = vmatpush1.msra.mxu0 %v80
    %381 = vmatprep.subr.mxu0 %v85
    %382 = vmatpush1.msra.mxu0 %v84
    %383 = vmatprep.subr.mxu0 %v89
    %384 = vmatpush1.msra.mxu0 %v88
    %385 = vmatprep.subr.mxu0 %v93
    %386 = vmatpush1.msra.mxu0 %v92
    %387 = vmatprep.subr.mxu0 %v97
    %388 = vmatpush1.msra.mxu0 %v96
    %389 = vmatprep.subr.mxu0 %v101
    %390 = vmatpush1.msra.mxu0 %v100
    %391 = vmatprep.subr.mxu0 %v105
    %392 = vmatpush1.msra.mxu0 %v104
    %393 = vmatprep.subr.mxu0 %v109
    %394 = vmatpush1.msra.mxu0 %v108
    %395 = vmatprep.subr.mxu0 0.0
    %396 = vmatpush1.msra.mxu0 0.0
    %397 = vmatprep.subr.mxu0 0.0
    %398 = vmatpush1.msra.mxu0 0.0
    %399 = vmatprep.subr.mxu0 0.0
    %400 = vmatpush1.msra.mxu0 0.0
    %401 = vmatprep.subr.mxu0 0.0
    %402 = vmatpush1.msra.mxu0 0.0
    %403 = vmatprep.subr.mxu0 0.0
    %404 = vmatpush1.msra.mxu0 0.0
    %405 = vmatprep.subr.mxu0 0.0
    %406 = vmatpush1.msra.mxu0 0.0
    %407 = vmatprep.subr.mxu0 0.0
    %408 = vmatpush1.msra.mxu0 0.0
    %409 = vmatprep.subr.mxu0 0.0
    %410 = vmatpush1.msra.mxu0 0.0
    %411 = vmatprep.subr.mxu0 0.0
    %412 = vmatpush1.msra.mxu0 0.0
    %413 = vmatprep.subr.mxu0 0.0
    %414 = vmatpush1.msra.mxu0 0.0
    %415 = vmatprep.subr.mxu0 0.0
    %416 = vmatpush1.msra.mxu0 0.0
    %417 = vmatprep.subr.mxu0 0.0
    %418 = vmatpush1.msra.mxu0 0.0
    %419 = vmatprep.subr.mxu0 0.0
    %420 = vmatpush1.msra.mxu0 0.0
    %421 = vmatprep.subr.mxu0 0.0
    %422 = vmatpush1.msra.mxu0 0.0
    %423 = vmatprep.subr.mxu0 0.0
    %424 = vmatpush1.msra.mxu0 0.0
    %425 = vmatprep.subr.mxu0 0.0
    %426 = vmatpush1.msra.mxu0 0.0
    %427 = vmatprep.mubr.f32.mxu0 0.0
    %428 = vmatmul.mubr.f32.gmra.mrb[0].mxu0 %v285
    %v429 = vpop.f32.mrb[0].mxu0
    %v430 = vadd.f32 0.0, %v429
    %v431 = vpop.f32.mrb[0].mxu0
    %v432 = vadd.f32 0.0, %v431
    %433 = vdwg.mxu0
    %v434 = vadd.f32 %v288, %v359
    %v435 = vadd.f32 %v289, %v361
    %v436 = vadd.f32 %v290, %v430
    %v437 = vadd.f32 %v291, %v432
    %v438 = vxor.u32 %v434, 2147483648
    %v439 = vmul.f32 %v438, 1.442695
    %v440 = vpow.pop %v439
    %v441 = vadd.f32 %v440, 1.0
    %v442 = vrcp.pop %v441
    %v443 = vmul.f32 1.0, %v442
    %v444 = vxor.u32 %v435, 2147483648
    %v445 = vmul.f32 %v444, 1.442695
    %v446 = vpow.pop %v445
    %v447 = vadd.f32 %v446, 1.0
    %v448 = vrcp.pop %v447
    %v449 = vmul.f32 1.0, %v448
    %v450 = vtanh.pop %v436
    %v451 = vxor.u32 %v437, 2147483648
    %v452 = vmul.f32 %v451, 1.442695
    %v453 = vpow.pop %v452
    %v454 = vadd.f32 %v453, 1.0
    %v455 = vrcp.pop %v454
    %v456 = vmul.f32 1.0, %v455
    %v457 = vmul.f32 %v449, %v283
    %v458 = vmul.f32 %v443, %v450
    %v459 = vadd.f32 %v457, %v458
    %v460 = vtanh.pop %v459
    %v461 = vmul.f32 %v456, %v460
    %s462 = scalar_lea.vmem [#allocation9], 8
    %463 = vst [vmem:[%s462] sm:$0xff] %v461
    %s464 = scalar_lea.vmem [#allocation4], 64
    %v465 = vld [vmem:[%s464] sm:$0xff]
    %v466 = vld [vmem:[%s464 + $0x8] sm:$0xff]
    %v467 = vld [vmem:[%s464 + $0x10] sm:$0xff]
    %v468 = vld [vmem:[%s464 + $0x18] sm:$0xff]
    %469 = vmatprep.subr.mxu0 %v47
    %470 = vmatpush1.msra.mxu0 %v46
    %471 = vmatprep.subr.mxu0 %v51
    %472 = vmatpush1.msra.mxu0 %v50
    %473 = vmatprep.subr.mxu0 %v55
    %474 = vmatpush1.msra.mxu0 %v54
    %475 = vmatprep.subr.mxu0 %v59
    %476 = vmatpush1.msra.mxu0 %v58
    %477 = vmatprep.subr.mxu0 %v63
    %478 = vmatpush1.msra.mxu0 %v62
    %479 = vmatprep.subr.mxu0 %v67
    %480 = vmatpush1.msra.mxu0 %v66
    %481 = vmatprep.subr.mxu0 %v71
    %482 = vmatpush1.msra.mxu0 %v70
    %483 = vmatprep.subr.mxu0 %v75
    %484 = vmatpush1.msra.mxu0 %v74
    %485 = vmatprep.subr.mxu0 %v79
    %486 = vmatpush1.msra.mxu0 %v78
    %487 = vmatprep.subr.mxu0 %v83
    %488 = vmatpush1.msra.mxu0 %v82
    %489 = vmatprep.subr.mxu0 %v87
    %490 = vmatpush1.msra.mxu0 %v86
    %491 = vmatprep.subr.mxu0 %v91
    %492 = vmatpush1.msra.mxu0 %v90
    %493 = vmatprep.subr.mxu0 %v95
    %494 = vmatpush1.msra.mxu0 %v94
    %495 = vmatprep.subr.mxu0 %v99
    %496 = vmatpush1.msra.mxu0 %v98
    %497 = vmatprep.subr.mxu0 %v103
    %498 = vmatpush1.msra.mxu0 %v102
    %499 = vmatprep.subr.mxu0 %v107
    %500 = vmatpush1.msra.mxu0 %v106
    %501 = vmatprep.subr.mxu0 0.0
    %502 = vmatpush1.msra.mxu0 0.0
    %503 = vmatprep.subr.mxu0 0.0
    %504 = vmatpush1.msra.mxu0 0.0
    %505 = vmatprep.subr.mxu0 0.0
    %506 = vmatpush1.msra.mxu0 0.0
    %507 = vmatprep.subr.mxu0 0.0
    %508 = vmatpush1.msra.mxu0 0.0
    %509 = vmatprep.subr.mxu0 0.0
    %510 = vmatpush1.msra.mxu0 0.0
    %511 = vmatprep.subr.mxu0 0.0
    %512 = vmatpush1.msra.mxu0 0.0
    %513 = vmatprep.subr.mxu0 0.0
    %514 = vmatpush1.msra.mxu0 0.0
    %515 = vmatprep.subr.mxu0 0.0
    %516 = vmatpush1.msra.mxu0 0.0
    %517 = vmatprep.subr.mxu0 0.0
    %518 = vmatpush1.msra.mxu0 0.0
    %519 = vmatprep.subr.mxu0 0.0
    %520 = vmatpush1.msra.mxu0 0.0
    %521 = vmatprep.subr.mxu0 0.0
    %522 = vmatpush1.msra.mxu0 0.0
    %523 = vmatprep.subr.mxu0 0.0
    %524 = vmatpush1.msra.mxu0 0.0
    %525 = vmatprep.subr.mxu0 0.0
    %526 = vmatpush1.msra.mxu0 0.0
    %527 = vmatprep.subr.mxu0 0.0
    %528 = vmatpush1.msra.mxu0 0.0
    %529 = vmatprep.subr.mxu0 0.0
    %530 = vmatpush1.msra.mxu0 0.0
    %531 = vmatprep.subr.mxu0 0.0
    %532 = vmatpush1.msra.mxu0 0.0
    %533 = vmatprep.mubr.f32.mxu0 0.0
    %534 = vmatmul.mubr.f32.gmra.mrb[0].mxu0 %v461
    %v535 = vpop.f32.mrb[0].mxu0
    %v536 = vadd.f32 0.0, %v535
    %v537 = vpop.f32.mrb[0].mxu0
    %v538 = vadd.f32 0.0, %v537
    %539 = vdwg.mxu0
    %540 = vmatprep.subr.mxu0 %v49
    %541 = vmatpush1.msra.mxu0 %v48
    %542 = vmatprep.subr.mxu0 %v53
    %543 = vmatpush1.msra.mxu0 %v52
    %544 = vmatprep.subr.mxu0 %v57
    %545 = vmatpush1.msra.mxu0 %v56
    %546 = vmatprep.subr.mxu0 %v61
    %547 = vmatpush1.msra.mxu0 %v60
    %548 = vmatprep.subr.mxu0 %v65
    %549 = vmatpush1.msra.mxu0 %v64
    %550 = vmatprep.subr.mxu0 %v69
    %551 = vmatpush1.msra.mxu0 %v68
    %552 = vmatprep.subr.mxu0 %v73
    %553 = vmatpush1.msra.mxu0 %v72
    %554 = vmatprep.subr.mxu0 %v77
    %555 = vmatpush1.msra.mxu0 %v76
    %556 = vmatprep.subr.mxu0 %v81
    %557 = vmatpush1.msra.mxu0 %v80
    %558 = vmatprep.subr.mxu0 %v85
    %559 = vmatpush1.msra.mxu0 %v84
    %560 = vmatprep.subr.mxu0 %v89
    %561 = vmatpush1.msra.mxu0 %v88
    %562 = vmatprep.subr.mxu0 %v93
    %563 = vmatpush1.msra.mxu0 %v92
    %564 = vmatprep.subr.mxu0 %v97
    %565 = vmatpush1.msra.mxu0 %v96
    %566 = vmatprep.subr.mxu0 %v101
    %567 = vmatpush1.msra.mxu0 %v100
    %568 = vmatprep.subr.mxu0 %v105
    %569 = vmatpush1.msra.mxu0 %v104
    %570 = vmatprep.subr.mxu0 %v109
    %571 = vmatpush1.msra.mxu0 %v108
    %572 = vmatprep.subr.mxu0 0.0
    %573 = vmatpush1.msra.mxu0 0.0
    %574 = vmatprep.subr.mxu0 0.0
    %575 = vmatpush1.msra.mxu0 0.0
    %576 = vmatprep.subr.mxu0 0.0
    %577 = vmatpush1.msra.mxu0 0.0
    %578 = vmatprep.subr.mxu0 0.0
    %579 = vmatpush1.msra.mxu0 0.0
    %580 = vmatprep.subr.mxu0 0.0
    %581 = vmatpush1.msra.mxu0 0.0
    %582 = vmatprep.subr.mxu0 0.0
    %583 = vmatpush1.msra.mxu0 0.0
    %584 = vmatprep.subr.mxu0 0.0
    %585 = vmatpush1.msra.mxu0 0.0
    %586 = vmatprep.subr.mxu0 0.0
    %587 = vmatpush1.msra.mxu0 0.0
    %588 = vmatprep.subr.mxu0 0.0
    %589 = vmatpush1.msra.mxu0 0.0
    %590 = vmatprep.subr.mxu0 0.0
    %591 = vmatpush1.msra.mxu0 0.0
    %592 = vmatprep.subr.mxu0 0.0
    %593 = vmatpush1.msra.mxu0 0.0
    %594 = vmatprep.subr.mxu0 0.0
    %595 = vmatpush1.msra.mxu0 0.0
    %596 = vmatprep.subr.mxu0 0.0
    %597 = vmatpush1.msra.mxu0 0.0
    %598 = vmatprep.subr.mxu0 0.0
    %599 = vmatpush1.msra.mxu0 0.0
    %600 = vmatprep.subr.mxu0 0.0
    %601 = vmatpush1.msra.mxu0 0.0
    %602 = vmatprep.subr.mxu0 0.0
    %603 = vmatpush1.msra.mxu0 0.0
    %604 = vmatprep.mubr.f32.mxu0 0.0
    %605 = vmatmul.mubr.f32.gmra.mrb[0].mxu0 %v461
    %v606 = vpop.f32.mrb[0].mxu0
    %v607 = vadd.f32 0.0, %v606
    %v608 = vpop.f32.mrb[0].mxu0
    %v609 = vadd.f32 0.0, %v608
    %610 = vdwg.mxu0
    %v611 = vadd.f32 %v465, %v536
    %v612 = vadd.f32 %v466, %v538
    %v613 = vadd.f32 %v467, %v607
    %v614 = vadd.f32 %v468, %v609
    %v615 = vxor.u32 %v611, 2147483648
    %v616 = vmul.f32 %v615, 1.442695
    %v617 = vpow.pop %v616
    %v618 = vadd.f32 %v617, 1.0
    %v619 = vrcp.pop %v618
    %v620 = vmul.f32 1.0, %v619
    %v621 = vxor.u32 %v612, 2147483648
    %v622 = vmul.f32 %v621, 1.442695
    %v623 = vpow.pop %v622
    %v624 = vadd.f32 %v623, 1.0
    %v625 = vrcp.pop %v624
    %v626 = vmul.f32 1.0, %v625
    %v627 = vtanh.pop %v613
    %v628 = vxor.u32 %v614, 2147483648
    %v629 = vmul.f32 %v628, 1.442695
    %v630 = vpow.pop %v629
    %v631 = vadd.f32 %v630, 1.0
    %v632 = vrcp.pop %v631
    %v633 = vmul.f32 1.0, %v632
    %v634 = vmul.f32 %v626, %v459
    %v635 = vmul.f32 %v620, %v627
    %v636 = vadd.f32 %v634, %v635
    %v637 = vtanh.pop %v636
    %v638 = vmul.f32 %v633, %v637
    %s639 = scalar_lea.vmem [#allocation9], 16
    %640 = vst [vmem:[%s639] sm:$0xff] %v638
    %s641 = scalar_lea.vmem [#allocation4], 96
    %v642 = vld [vmem:[%s641] sm:$0xff]
    %v643 = vld [vmem:[%s641 + $0x8] sm:$0xff]
    %v644 = vld [vmem:[%s641 + $0x10] sm:$0xff]
    %v645 = vld [vmem:[%s641 + $0x18] sm:$0xff]
    %646 = vmatprep.subr.mxu0 %v47
    %647 = vmatpush1.msra.mxu0 %v46
    %648 = vmatprep.subr.mxu0 %v51
    %649 = vmatpush1.msra.mxu0 %v50
    %650 = vmatprep.subr.mxu0 %v55
    %651 = vmatpush1.msra.mxu0 %v54
    %652 = vmatprep.subr.mxu0 %v59
    %653 = vmatpush1.msra.mxu0 %v58
    %654 = vmatprep.subr.mxu0 %v63
    %655 = vmatpush1.msra.mxu0 %v62
    %656 = vmatprep.subr.mxu0 %v67
    %657 = vmatpush1.msra.mxu0 %v66
    %658 = vmatprep.subr.mxu0 %v71
    %659 = vmatpush1.msra.mxu0 %v70
    %660 = vmatprep.subr.mxu0 %v75
    %661 = vmatpush1.msra.mxu0 %v74
    %662 = vmatprep.subr.mxu0 %v79
    %663 = vmatpush1.msra.mxu0 %v78
    %664 = vmatprep.subr.mxu0 %v83
    %665 = vmatpush1.msra.mxu0 %v82
    %666 = vmatprep.subr.mxu0 %v87
    %667 = vmatpush1.msra.mxu0 %v86
    %668 = vmatprep.subr.mxu0 %v91
    %669 = vmatpush1.msra.mxu0 %v90
    %670 = vmatprep.subr.mxu0 %v95
    %671 = vmatpush1.msra.mxu0 %v94
    %672 = vmatprep.subr.mxu0 %v99
    %673 = vmatpush1.msra.mxu0 %v98
    %674 = vmatprep.subr.mxu0 %v103
    %675 = vmatpush1.msra.mxu0 %v102
    %676 = vmatprep.subr.mxu0 %v107
    %677 = vmatpush1.msra.mxu0 %v106
    %678 = vmatprep.subr.mxu0 0.0
    %679 = vmatpush1.msra.mxu0 0.0
    %680 = vmatprep.subr.mxu0 0.0
    %681 = vmatpush1.msra.mxu0 0.0
    %682 = vmatprep.subr.mxu0 0.0
    %683 = vmatpush1.msra.mxu0 0.0
    %684 = vmatprep.subr.mxu0 0.0
    %685 = vmatpush1.msra.mxu0 0.0
    %686 = vmatprep.subr.mxu0 0.0
    %687 = vmatpush1.msra.mxu0 0.0
    %688 = vmatprep.subr.mxu0 0.0
    %689 = vmatpush1.msra.mxu0 0.0
    %690 = vmatprep.subr.mxu0 0.0
    %691 = vmatpush1.msra.mxu0 0.0
    %692 = vmatprep.subr.mxu0 0.0
    %693 = vmatpush1.msra.mxu0 0.0
    %694 = vmatprep.subr.mxu0 0.0
    %695 = vmatpush1.msra.mxu0 0.0
    %696 = vmatprep.subr.mxu0 0.0
    %697 = vmatpush1.msra.mxu0 0.0
    %698 = vmatprep.subr.mxu0 0.0
    %699 = vmatpush1.msra.mxu0 0.0
    %700 = vmatprep.subr.mxu0 0.0
    %701 = vmatpush1.msra.mxu0 0.0
    %702 = vmatprep.subr.mxu0 0.0
    %703 = vmatpush1.msra.mxu0 0.0
    %704 = vmatprep.subr.mxu0 0.0
    %705 = vmatpush1.msra.mxu0 0.0
    %706 = vmatprep.subr.mxu0 0.0
    %707 = vmatpush1.msra.mxu0 0.0
    %708 = vmatprep.subr.mxu0 0.0
    %709 = vmatpush1.msra.mxu0 0.0
    %710 = vmatprep.mubr.f32.mxu0 0.0
    %711 = vmatmul.mubr.f32.gmra.mrb[0].mxu0 %v638
    %v712 = vpop.f32.mrb[0].mxu0
    %v713 = vadd.f32 0.0, %v712
    %v714 = vpop.f32.mrb[0].mxu0
    %v715 = vadd.f32 0.0, %v714
    %716 = vdwg.mxu0
    %717 = vmatprep.subr.mxu0 %v49
    %718 = vmatpush1.msra.mxu0 %v48
    %719 = vmatprep.subr.mxu0 %v53
    %720 = vmatpush1.msra.mxu0 %v52
    %721 = vmatprep.subr.mxu0 %v57
    %722 = vmatpush1.msra.mxu0 %v56
    %723 = vmatprep.subr.mxu0 %v61
    %724 = vmatpush1.msra.mxu0 %v60
    %725 = vmatprep.subr.mxu0 %v65
    %726 = vmatpush1.msra.mxu0 %v64
    %727 = vmatprep.subr.mxu0 %v69
    %728 = vmatpush1.msra.mxu0 %v68
    %729 = vmatprep.subr.mxu0 %v73
    %730 = vmatpush1.msra.mxu0 %v72
    %731 = vmatprep.subr.mxu0 %v77
    %732 = vmatpush1.msra.mxu0 %v76
    %733 = vmatprep.subr.mxu0 %v81
    %734 = vmatpush1.msra.mxu0 %v80
    %735 = vmatprep.subr.mxu0 %v85
    %736 = vmatpush1.msra.mxu0 %v84
    %737 = vmatprep.subr.mxu0 %v89
    %738 = vmatpush1.msra.mxu0 %v88
    %739 = vmatprep.subr.mxu0 %v93
    %740 = vmatpush1.msra.mxu0 %v92
    %741 = vmatprep.subr.mxu0 %v97
    %742 = vmatpush1.msra.mxu0 %v96
    %743 = vmatprep.subr.mxu0 %v101
    %744 = vmatpush1.msra.mxu0 %v100
    %745 = vmatprep.subr.mxu0 %v105
    %746 = vmatpush1.msra.mxu0 %v104
    %747 = vmatprep.subr.mxu0 %v109
    %748 = vmatpush1.msra.mxu0 %v108
    %749 = vmatprep.subr.mxu0 0.0
    %750 = vmatpush1.msra.mxu0 0.0
    %751 = vmatprep.subr.mxu0 0.0
    %752 = vmatpush1.msra.mxu0 0.0
    %753 = vmatprep.subr.mxu0 0.0
    %754 = vmatpush1.msra.mxu0 0.0
    %755 = vmatprep.subr.mxu0 0.0
    %756 = vmatpush1.msra.mxu0 0.0
    %757 = vmatprep.subr.mxu0 0.0
    %758 = vmatpush1.msra.mxu0 0.0
    %759 = vmatprep.subr.mxu0 0.0
    %760 = vmatpush1.msra.mxu0 0.0
    %761 = vmatprep.subr.mxu0 0.0
    %762 = vmatpush1.msra.mxu0 0.0
    %763 = vmatprep.subr.mxu0 0.0
    %764 = vmatpush1.msra.mxu0 0.0
    %765 = vmatprep.subr.mxu0 0.0
    %766 = vmatpush1.msra.mxu0 0.0
    %767 = vmatprep.subr.mxu0 0.0
    %768 = vmatpush1.msra.mxu0 0.0
    %769 = vmatprep.subr.mxu0 0.0
    %770 = vmatpush1.msra.mxu0 0.0
    %771 = vmatprep.subr.mxu0 0.0
    %772 = vmatpush1.msra.mxu0 0.0
    %773 = vmatprep.subr.mxu0 0.0
    %774 = vmatpush1.msra.mxu0 0.0
    %775 = vmatprep.subr.mxu0 0.0
    %776 = vmatpush1.msra.mxu0 0.0
    %777 = vmatprep.subr.mxu0 0.0
    %778 = vmatpush1.msra.mxu0 0.0
    %779 = vmatprep.subr.mxu0 0.0
    %780 = vmatpush1.msra.mxu0 0.0
    %781 = vmatprep.mubr.f32.mxu0 0.0
    %782 = vmatmul.mubr.f32.gmra.mrb[0].mxu0 %v638
    %v783 = vpop.f32.mrb[0].mxu0
    %v784 = vadd.f32 0.0, %v783
    %v785 = vpop.f32.mrb[0].mxu0
    %v786 = vadd.f32 0.0, %v785
    %787 = vdwg.mxu0
    %v788 = vadd.f32 %v642, %v713
    %v789 = vadd.f32 %v643, %v715
    %v790 = vadd.f32 %v644, %v784
    %v791 = vadd.f32 %v645, %v786
    %v792 = vxor.u32 %v788, 2147483648
    %v793 = vmul.f32 %v792, 1.442695
    %v794 = vpow.pop %v793
    %v795 = vadd.f32 %v794, 1.0
    %v796 = vrcp.pop %v795
    %v797 = vmul.f32 1.0, %v796
    %v798 = vxor.u32 %v789, 2147483648
    %v799 = vmul.f32 %v798, 1.442695
    %v800 = vpow.pop %v799
    %v801 = vadd.f32 %v800, 1.0
    %v802 = vrcp.pop %v801
    %v803 = vmul.f32 1.0, %v802
    %v804 = vtanh.pop %v790
    %v805 = vxor.u32 %v791, 2147483648
    %v806 = vmul.f32 %v805, 1.442695
    %v807 = vpow.pop %v806
    %v808 = vadd.f32 %v807, 1.0
    %v809 = vrcp.pop %v808
    %v810 = vmul.f32 1.0, %v809
    %v811 = vmul.f32 %v803, %v636
    %v812 = vmul.f32 %v797, %v804
    %v813 = vadd.f32 %v811, %v812
    %v814 = vtanh.pop %v813
    %v815 = vmul.f32 %v810, %v814
    %s816 = scalar_lea.vmem [#allocation9], 24
    %817 = vst [vmem:[%s816] sm:$0xff] %v815
    %s818 = scalar_lea.vmem [#allocation4], 128
    %v819 = vld [vmem:[%s818] sm:$0xff]
    %v820 = vld [vmem:[%s818 + $0x8] sm:$0xff]
    %v821 = vld [vmem:[%s818 + $0x10] sm:$0xff]
    %v822 = vld [vmem:[%s818 + $0x18] sm:$0xff]
    %823 = vmatprep.subr.mxu0 %v47
    %824 = vmatpush1.msra.mxu0 %v46
    %825 = vmatprep.subr.mxu0 %v51
    %826 = vmatpush1.msra.mxu0 %v50
    %827 = vmatprep.subr.mxu0 %v55
    %828 = vmatpush1.msra.mxu0 %v54
    %829 = vmatprep.subr.mxu0 %v59
    %830 = vmatpush1.msra.mxu0 %v58
    %831 = vmatprep.subr.mxu0 %v63
    %832 = vmatpush1.msra.mxu0 %v62
    %833 = vmatprep.subr.mxu0 %v67
    %834 = vmatpush1.msra.mxu0 %v66
    %835 = vmatprep.subr.mxu0 %v71
    %836 = vmatpush1.msra.mxu0 %v70
    %837 = vmatprep.subr.mxu0 %v75
    %838 = vmatpush1.msra.mxu0 %v74
    %839 = vmatprep.subr.mxu0 %v79
    %840 = vmatpush1.msra.mxu0 %v78
    %841 = vmatprep.subr.mxu0 %v83
    %842 = vmatpush1.msra.mxu0 %v82
    %843 = vmatprep.subr.mxu0 %v87
    %844 = vmatpush1.msra.mxu0 %v86
    %845 = vmatprep.subr.mxu0 %v91
    %846 = vmatpush1.msra.mxu0 %v90
    %847 = vmatprep.subr.mxu0 %v95
    %848 = vmatpush1.msra.mxu0 %v94
    %849 = vmatprep.subr.mxu0 %v99
    %850 = vmatpush1.msra.mxu0 %v98
    %851 = vmatprep.subr.mxu0 %v103
    %852 = vmatpush1.msra.mxu0 %v102
    %853 = vmatprep.subr.mxu0 %v107
    %854 = vmatpush1.msra.mxu0 %v106
    %855 = vmatprep.subr.mxu0 0.0
    %856 = vmatpush1.msra.mxu0 0.0
    %857 = vmatprep.subr.mxu0 0.0
    %858 = vmatpush1.msra.mxu0 0.0
    %859 = vmatprep.subr.mxu0 0.0
    %860 = vmatpush1.msra.mxu0 0.0
    %861 = vmatprep.subr.mxu0 0.0
    %862 = vmatpush1.msra.mxu0 0.0
    %863 = vmatprep.subr.mxu0 0.0
    %864 = vmatpush1.msra.mxu0 0.0
    %865 = vmatprep.subr.mxu0 0.0
    %866 = vmatpush1.msra.mxu0 0.0
    %867 = vmatprep.subr.mxu0 0.0
    %868 = vmatpush1.msra.mxu0 0.0
    %869 = vmatprep.subr.mxu0 0.0
    %870 = vmatpush1.msra.mxu0 0.0
    %871 = vmatprep.subr.mxu0 0.0
    %872 = vmatpush1.msra.mxu0 0.0
    %873 = vmatprep.subr.mxu0 0.0
    %874 = vmatpush1.msra.mxu0 0.0
    %875 = vmatprep.subr.mxu0 0.0
    %876 = vmatpush1.msra.mxu0 0.0
    %877 = vmatprep.subr.mxu0 0.0
    %878 = vmatpush1.msra.mxu0 0.0
    %879 = vmatprep.subr.mxu0 0.0
    %880 = vmatpush1.msra.mxu0 0.0
    %881 = vmatprep.subr.mxu0 0.0
    %882 = vmatpush1.msra.mxu0 0.0
    %883 = vmatprep.subr.mxu0 0.0
    %884 = vmatpush1.msra.mxu0 0.0
    %885 = vmatprep.subr.mxu0 0.0
    %886 = vmatpush1.msra.mxu0 0.0
    %887 = vmatprep.mubr.f32.mxu0 0.0
    %888 = vmatmul.mubr.f32.gmra.mrb[0].mxu0 %v815
    %v889 = vpop.f32.mrb[0].mxu0
    %v890 = vadd.f32 0.0, %v889
    %v891 = vpop.f32.mrb[0].mxu0
    %v892 = vadd.f32 0.0, %v891
    %893 = vdwg.mxu0
    %894 = vmatprep.subr.mxu0 %v49
    %895 = vmatpush1.msra.mxu0 %v48
    %896 = vmatprep.subr.mxu0 %v53
    %897 = vmatpush1.msra.mxu0 %v52
    %898 = vmatprep.subr.mxu0 %v57
    %899 = vmatpush1.msra.mxu0 %v56
    %900 = vmatprep.subr.mxu0 %v61
    %901 = vmatpush1.msra.mxu0 %v60
    %902 = vmatprep.subr.mxu0 %v65
    %903 = vmatpush1.msra.mxu0 %v64
    %904 = vmatprep.subr.mxu0 %v69
    %905 = vmatpush1.msra.mxu0 %v68
    %906 = vmatprep.subr.mxu0 %v73
    %907 = vmatpush1.msra.mxu0 %v72
    %908 = vmatprep.subr.mxu0 %v77
    %909 = vmatpush1.msra.mxu0 %v76
    %910 = vmatprep.subr.mxu0 %v81
    %911 = vmatpush1.msra.mxu0 %v80
    %912 = vmatprep.subr.mxu0 %v85
    %913 = vmatpush1.msra.mxu0 %v84
    %914 = vmatprep.subr.mxu0 %v89
    %915 = vmatpush1.msra.mxu0 %v88
    %916 = vmatprep.subr.mxu0 %v93
    %917 = vmatpush1.msra.mxu0 %v92
    %918 = vmatprep.subr.mxu0 %v97
    %919 = vmatpush1.msra.mxu0 %v96
    %920 = vmatprep.subr.mxu0 %v101
    %921 = vmatpush1.msra.mxu0 %v100
    %922 = vmatprep.subr.mxu0 %v105
    %923 = vmatpush1.msra.mxu0 %v104
    %924 = vmatprep.subr.mxu0 %v109
    %925 = vmatpush1.msra.mxu0 %v108
    %926 = vmatprep.subr.mxu0 0.0
    %927 = vmatpush1.msra.mxu0 0.0
    %928 = vmatprep.subr.mxu0 0.0
    %929 = vmatpush1.msra.mxu0 0.0
    %930 = vmatprep.subr.mxu0 0.0
    %931 = vmatpush1.msra.mxu0 0.0
    %932 = vmatprep.subr.mxu0 0.0
    %933 = vmatpush1.msra.mxu0 0.0
    %934 = vmatprep.subr.mxu0 0.0
    %935 = vmatpush1.msra.mxu0 0.0
    %936 = vmatprep.subr.mxu0 0.0
    %937 = vmatpush1.msra.mxu0 0.0
    %938 = vmatprep.subr.mxu0 0.0
    %939 = vmatpush1.msra.mxu0 0.0
    %940 = vmatprep.subr.mxu0 0.0
    %941 = vmatpush1.msra.mxu0 0.0
    %942 = vmatprep.subr.mxu0 0.0
    %943 = vmatpush1.msra.mxu0 0.0
    %944 = vmatprep.subr.mxu0 0.0
    %945 = vmatpush1.msra.mxu0 0.0
    %946 = vmatprep.subr.mxu0 0.0
    %947 = vmatpush1.msra.mxu0 0.0
    %948 = vmatprep.subr.mxu0 0.0
    %949 = vmatpush1.msra.mxu0 0.0
    %950 = vmatprep.subr.mxu0 0.0
    %951 = vmatpush1.msra.mxu0 0.0
    %952 = vmatprep.subr.mxu0 0.0
    %953 = vmatpush1.msra.mxu0 0.0
    %954 = vmatprep.subr.mxu0 0.0
    %955 = vmatpush1.msra.mxu0 0.0
    %956 = vmatprep.subr.mxu0 0.0
    %957 = vmatpush1.msra.mxu0 0.0
    %958 = vmatprep.mubr.f32.mxu0 0.0
    %959 = vmatmul.mubr.f32.gmra.mrb[0].mxu0 %v815
    %v960 = vpop.f32.mrb[0].mxu0
    %v961 = vadd.f32 0.0, %v960
    %v962 = vpop.f32.mrb[0].mxu0
    %v963 = vadd.f32 0.0, %v962
    %964 = vdwg.mxu0
    %v965 = vadd.f32 %v819, %v890
    %v966 = vadd.f32 %v820, %v892
    %v967 = vadd.f32 %v821, %v961
    %v968 = vadd.f32 %v822, %v963
    %v969 = vxor.u32 %v965, 2147483648
    %v970 = vmul.f32 %v969, 1.442695
    %v971 = vpow.pop %v970
    %v972 = vadd.f32 %v971, 1.0
    %v973 = vrcp.pop %v972
    %v974 = vmul.f32 1.0, %v973
    %v975 = vxor.u32 %v966, 2147483648
    %v976 = vmul.f32 %v975, 1.442695
    %v977 = vpow.pop %v976
    %v978 = vadd.f32 %v977, 1.0
    %v979 = vrcp.pop %v978
    %v980 = vmul.f32 1.0, %v979
    %v981 = vtanh.pop %v967
    %v982 = vxor.u32 %v968, 2147483648
    %v983 = vmul.f32 %v982, 1.442695
    %v984 = vpow.pop %v983
    %v985 = vadd.f32 %v984, 1.0
    %v986 = vrcp.pop %v985
    %v987 = vmul.f32 1.0, %v986
    %v988 = vmul.f32 %v980, %v813
    %v989 = vmul.f32 %v974, %v981
    %v990 = vadd.f32 %v988, %v989
    %v991 = vtanh.pop %v990
    %v992 = vmul.f32 %v987, %v991
    %s993 = scalar_lea.vmem [#allocation9], 32
    %994 = vst [vmem:[%s993] sm:$0xff] %v992
    %s995 = scalar_lea.vmem [#allocation4], 160
    %v996 = vld [vmem:[%s995] sm:$0xff]
    %v997 = vld [vmem:[%s995 + $0x8] sm:$0xff]
    %v998 = vld [vmem:[%s995 + $0x10] sm:$0xff]
    %v999 = vld [vmem:[%s995 + $0x18] sm:$0xff]
    %1000 = vmatprep.subr.mxu0 %v47
    %1001 = vmatpush1.msra.mxu0 %v46
    %1002 = vmatprep.subr.mxu0 %v51
    %1003 = vmatpush1.msra.mxu0 %v50
    %1004 = vmatprep.subr.mxu0 %v55
    %1005 = vmatpush1.msra.mxu0 %v54
    %1006 = vmatprep.subr.mxu0 %v59
    %1007 = vmatpush1.msra.mxu0 %v58
    %1008 = vmatprep.subr.mxu0 %v63
    %1009 = vmatpush1.msra.mxu0 %v62
    %1010 = vmatprep.subr.mxu0 %v67
    %1011 = vmatpush1.msra.mxu0 %v66
    %1012 = vmatprep.subr.mxu0 %v71
    %1013 = vmatpush1.msra.mxu0 %v70
    %1014 = vmatprep.subr.mxu0 %v75
    %1015 = vmatpush1.msra.mxu0 %v74
    %1016 = vmatprep.subr.mxu0 %v79
    %1017 = vmatpush1.msra.mxu0 %v78
    %1018 = vmatprep.subr.mxu0 %v83
    %1019 = vmatpush1.msra.mxu0 %v82
    %1020 = vmatprep.subr.mxu0 %v87
    %1021 = vmatpush1.msra.mxu0 %v86
    %1022 = vmatprep.subr.mxu0 %v91
    %1023 = vmatpush1.msra.mxu0 %v90
    %1024 = vmatprep.subr.mxu0 %v95
    %1025 = vmatpush1.msra.mxu0 %v94
    %1026 = vmatprep.subr.mxu0 %v99
    %1027 = vmatpush1.msra.mxu0 %v98
    %1028 = vmatprep.subr.mxu0 %v103
    %1029 = vmatpush1.msra.mxu0 %v102
    %1030 = vmatprep.subr.mxu0 %v107
    %1031 = vmatpush1.msra.mxu0 %v106
    %1032 = vmatprep.subr.mxu0 0.0
    %1033 = vmatpush1.msra.mxu0 0.0
    %1034 = vmatprep.subr.mxu0 0.0
    %1035 = vmatpush1.msra.mxu0 0.0
    %1036 = vmatprep.subr.mxu0 0.0
    %1037 = vmatpush1.msra.mxu0 0.0
    %1038 = vmatprep.subr.mxu0 0.0
    %1039 = vmatpush1.msra.mxu0 0.0
    %1040 = vmatprep.subr.mxu0 0.0
    %1041 = vmatpush1.msra.mxu0 0.0
    %1042 = vmatprep.subr.mxu0 0.0
    %1043 = vmatpush1.msra.mxu0 0.0
    %1044 = vmatprep.subr.mxu0 0.0
    %1045 = vmatpush1.msra.mxu0 0.0
    %1046 = vmatprep.subr.mxu0 0.0
    %1047 = vmatpush1.msra.mxu0 0.0
    %1048 = vmatprep.subr.mxu0 0.0
    %1049 = vmatpush1.msra.mxu0 0.0
    %1050 = vmatprep.subr.mxu0 0.0
    %1051 = vmatpush1.msra.mxu0 0.0
    %1052 = vmatprep.subr.mxu0 0.0
    %1053 = vmatpush1.msra.mxu0 0.0
    %1054 = vmatprep.subr.mxu0 0.0
    %1055 = vmatpush1.msra.mxu0 0.0
    %1056 = vmatprep.subr.mxu0 0.0
    %1057 = vmatpush1.msra.mxu0 0.0
    %1058 = vmatprep.subr.mxu0 0.0
    %1059 = vmatpush1.msra.mxu0 0.0
    %1060 = vmatprep.subr.mxu0 0.0
    %1061 = vmatpush1.msra.mxu0 0.0
    %1062 = vmatprep.subr.mxu0 0.0
    %1063 = vmatpush1.msra.mxu0 0.0
    %1064 = vmatprep.mubr.f32.mxu0 0.0
    %1065 = vmatmul.mubr.f32.gmra.mrb[0].mxu0 %v992
    %v1066 = vpop.f32.mrb[0].mxu0
    %v1067 = vadd.f32 0.0, %v1066
    %v1068 = vpop.f32.mrb[0].mxu0
    %v1069 = vadd.f32 0.0, %v1068
    %1070 = vdwg.mxu0
    %1071 = vmatprep.subr.mxu0 %v49
    %1072 = vmatpush1.msra.mxu0 %v48
    %1073 = vmatprep.subr.mxu0 %v53
    %1074 = vmatpush1.msra.mxu0 %v52
    %1075 = vmatprep.subr.mxu0 %v57
    %1076 = vmatpush1.msra.mxu0 %v56
    %1077 = vmatprep.subr.mxu0 %v61
    %1078 = vmatpush1.msra.mxu0 %v60
    %1079 = vmatprep.subr.mxu0 %v65
    %1080 = vmatpush1.msra.mxu0 %v64
    %1081 = vmatprep.subr.mxu0 %v69
    %1082 = vmatpush1.msra.mxu0 %v68
    %1083 = vmatprep.subr.mxu0 %v73
    %1084 = vmatpush1.msra.mxu0 %v72
    %1085 = vmatprep.subr.mxu0 %v77
    %1086 = vmatpush1.msra.mxu0 %v76
    %1087 = vmatprep.subr.mxu0 %v81
    %1088 = vmatpush1.msra.mxu0 %v80
    %1089 = vmatprep.subr.mxu0 %v85
    %1090 = vmatpush1.msra.mxu0 %v84
    %1091 = vmatprep.subr.mxu0 %v89
    %1092 = vmatpush1.msra.mxu0 %v88
    %1093 = vmatprep.subr.mxu0 %v93
    %1094 = vmatpush1.msra.mxu0 %v92
    %1095 = vmatprep.subr.mxu0 %v97
    %1096 = vmatpush1.msra.mxu0 %v96
    %1097 = vmatprep.subr.mxu0 %v101
    %1098 = vmatpush1.msra.mxu0 %v100
    %1099 = vmatprep.subr.mxu0 %v105
    %1100 = vmatpush1.msra.mxu0 %v104
    %1101 = vmatprep.subr.mxu0 %v109
    %1102 = vmatpush1.msra.mxu0 %v108
    %1103 = vmatprep.subr.mxu0 0.0
    %1104 = vmatpush1.msra.mxu0 0.0
    %1105 = vmatprep.subr.mxu0 0.0
    %1106 = vmatpush1.msra.mxu0 0.0
    %1107 = vmatprep.subr.mxu0 0.0
    %1108 = vmatpush1.msra.mxu0 0.0
    %1109 = vmatprep.subr.mxu0 0.0
    %1110 = vmatpush1.msra.mxu0 0.0
    %1111 = vmatprep.subr.mxu0 0.0
    %1112 = vmatpush1.msra.mxu0 0.0
    %1113 = vmatprep.subr.mxu0 0.0
    %1114 = vmatpush1.msra.mxu0 0.0
    %1115 = vmatprep.subr.mxu0 0.0
    %1116 = vmatpush1.msra.mxu0 0.0
    %1117 = vmatprep.subr.mxu0 0.0
    %1118 = vmatpush1.msra.mxu0 0.0
    %1119 = vmatprep.subr.mxu0 0.0
    %1120 = vmatpush1.msra.mxu0 0.0
    %1121 = vmatprep.subr.mxu0 0.0
    %1122 = vmatpush1.msra.mxu0 0.0
    %1123 = vmatprep.subr.mxu0 0.0
    %1124 = vmatpush1.msra.mxu0 0.0
    %1125 = vmatprep.subr.mxu0 0.0
    %1126 = vmatpush1.msra.mxu0 0.0
    %1127 = vmatprep.subr.mxu0 0.0
    %1128 = vmatpush1.msra.mxu0 0.0
    %1129 = vmatprep.subr.mxu0 0.0
    %1130 = vmatpush1.msra.mxu0 0.0
    %1131 = vmatprep.subr.mxu0 0.0
    %1132 = vmatpush1.msra.mxu0 0.0
    %1133 = vmatprep.subr.mxu0 0.0
    %1134 = vmatpush1.msra.mxu0 0.0
    %1135 = vmatprep.mubr.f32.mxu0 0.0
    %1136 = vmatmul.mubr.f32.gmra.mrb[0].mxu0 %v992
    %v1137 = vpop.f32.mrb[0].mxu0
    %v1138 = vadd.f32 0.0, %v1137
    %v1139 = vpop.f32.mrb[0].mxu0
    %v1140 = vadd.f32 0.0, %v1139
    %1141 = vdwg.mxu0
    %v1142 = vadd.f32 %v996, %v1067
    %v1143 = vadd.f32 %v997, %v1069
    %v1144 = vadd.f32 %v998, %v1138
    %v1145 = vadd.f32 %v999, %v1140
    %v1146 = vxor.u32 %v1142, 2147483648
    %v1147 = vmul.f32 %v1146, 1.442695
    %v1148 = vpow.pop %v1147
    %v1149 = vadd.f32 %v1148, 1.0
    %v1150 = vrcp.pop %v1149
    %v1151 = vmul.f32 1.0, %v1150
    %v1152 = vxor.u32 %v1143, 2147483648
    %v1153 = vmul.f32 %v1152, 1.442695
    %v1154 = vpow.pop %v1153
    %v1155 = vadd.f32 %v1154, 1.0
    %v1156 = vrcp.pop %v1155
    %v1157 = vmul.f32 1.0, %v1156
    %v1158 = vtanh.pop %v1144
    %v1159 = vxor.u32 %v1145, 2147483648
    %v1160 = vmul.f32 %v1159, 1.442695
    %v1161 = vpow.pop %v1160
    %v1162 = vadd.f32 %v1161, 1.0
    %v1163 = vrcp.pop %v1162
    %v1164 = vmul.f32 1.0, %v1163
    %v1165 = vmul.f32 %v1157, %v990
    %v1166 = vmul.f32 %v1151, %v1158
    %v1167 = vadd.f32 %v1165, %v1166
    %v1168 = vtanh.pop %v1167
    %v1169 = vmul.f32 %v1164, %v1168
    %s1170 = scalar_lea.vmem [#allocation9], 40
    %1171 = vst [vmem:[%s1170] sm:$0xff] %v1169
    %s1172 = scalar_lea.vmem [#allocation4], 192
    %v1173 = vld [vmem:[%s1172] sm:$0xff]
    %v1174 = vld [vmem:[%s1172 + $0x8] sm:$0xff]
    %v1175 = vld [vmem:[%s1172 + $0x10] sm:$0xff]
    %v1176 = vld [vmem:[%s1172 + $0x18] sm:$0xff]
    %1177 = vmatprep.subr.mxu0 %v47
    %1178 = vmatpush1.msra.mxu0 %v46
    %1179 = vmatprep.subr.mxu0 %v51
    %1180 = vmatpush1.msra.mxu0 %v50
    %1181 = vmatprep.subr.mxu0 %v55
    %1182 = vmatpush1.msra.mxu0 %v54
    %1183 = vmatprep.subr.mxu0 %v59
    %1184 = vmatpush1.msra.mxu0 %v58
    %1185 = vmatprep.subr.mxu0 %v63
    %1186 = vmatpush1.msra.mxu0 %v62
    %1187 = vmatprep.subr.mxu0 %v67
    %1188 = vmatpush1.msra.mxu0 %v66
    %1189 = vmatprep.subr.mxu0 %v71
    %1190 = vmatpush1.msra.mxu0 %v70
    %1191 = vmatprep.subr.mxu0 %v75
    %1192 = vmatpush1.msra.mxu0 %v74
    %1193 = vmatprep.subr.mxu0 %v79
    %1194 = vmatpush1.msra.mxu0 %v78
    %1195 = vmatprep.subr.mxu0 %v83
    %1196 = vmatpush1.msra.mxu0 %v82
    %1197 = vmatprep.subr.mxu0 %v87
    %1198 = vmatpush1.msra.mxu0 %v86
    %1199 = vmatprep.subr.mxu0 %v91
    %1200 = vmatpush1.msra.mxu0 %v90
    %1201 = vmatprep.subr.mxu0 %v95
    %1202 = vmatpush1.msra.mxu0 %v94
    %1203 = vmatprep.subr.mxu0 %v99
    %1204 = vmatpush1.msra.mxu0 %v98
    %1205 = vmatprep.subr.mxu0 %v103
    %1206 = vmatpush1.msra.mxu0 %v102
    %1207 = vmatprep.subr.mxu0 %v107
    %1208 = vmatpush1.msra.mxu0 %v106
    %1209 = vmatprep.subr.mxu0 0.0
    %1210 = vmatpush1.msra.mxu0 0.0
    %1211 = vmatprep.subr.mxu0 0.0
    %1212 = vmatpush1.msra.mxu0 0.0
    %1213 = vmatprep.subr.mxu0 0.0
    %1214 = vmatpush1.msra.mxu0 0.0
    %1215 = vmatprep.subr.mxu0 0.0
    %1216 = vmatpush1.msra.mxu0 0.0
    %1217 = vmatprep.subr.mxu0 0.0
    %1218 = vmatpush1.msra.mxu0 0.0
    %1219 = vmatprep.subr.mxu0 0.0
    %1220 = vmatpush1.msra.mxu0 0.0
    %1221 = vmatprep.subr.mxu0 0.0
    %1222 = vmatpush1.msra.mxu0 0.0
    %1223 = vmatprep.subr.mxu0 0.0
    %1224 = vmatpush1.msra.mxu0 0.0
    %1225 = vmatprep.subr.mxu0 0.0
    %1226 = vmatpush1.msra.mxu0 0.0
    %1227 = vmatprep.subr.mxu0 0.0
    %1228 = vmatpush1.msra.mxu0 0.0
    %1229 = vmatprep.subr.mxu0 0.0
    %1230 = vmatpush1.msra.mxu0 0.0
    %1231 = vmatprep.subr.mxu0 0.0
    %1232 = vmatpush1.msra.mxu0 0.0
    %1233 = vmatprep.subr.mxu0 0.0
    %1234 = vmatpush1.msra.mxu0 0.0
    %1235 = vmatprep.subr.mxu0 0.0
    %1236 = vmatpush1.msra.mxu0 0.0
    %1237 = vmatprep.subr.mxu0 0.0
    %1238 = vmatpush1.msra.mxu0 0.0
    %1239 = vmatprep.subr.mxu0 0.0
    %1240 = vmatpush1.msra.mxu0 0.0
    %1241 = vmatprep.mubr.f32.mxu0 0.0
    %1242 = vmatmul.mubr.f32.gmra.mrb[0].mxu0 %v1169
    %v1243 = vpop.f32.mrb[0].mxu0
    %v1244 = vadd.f32 0.0, %v1243
    %v1245 = vpop.f32.mrb[0].mxu0
    %v1246 = vadd.f32 0.0, %v1245
    %1247 = vdwg.mxu0
    %1248 = vmatprep.subr.mxu0 %v49
    %1249 = vmatpush1.msra.mxu0 %v48
    %1250 = vmatprep.subr.mxu0 %v53
    %1251 = vmatpush1.msra.mxu0 %v52
    %1252 = vmatprep.subr.mxu0 %v57
    %1253 = vmatpush1.msra.mxu0 %v56
    %1254 = vmatprep.subr.mxu0 %v61
    %1255 = vmatpush1.msra.mxu0 %v60
    %1256 = vmatprep.subr.mxu0 %v65
    %1257 = vmatpush1.msra.mxu0 %v64
    %1258 = vmatprep.subr.mxu0 %v69
    %1259 = vmatpush1.msra.mxu0 %v68
    %1260 = vmatprep.subr.mxu0 %v73
    %1261 = vmatpush1.msra.mxu0 %v72
    %1262 = vmatprep.subr.mxu0 %v77
    %1263 = vmatpush1.msra.mxu0 %v76
    %1264 = vmatprep.subr.mxu0 %v81
    %1265 = vmatpush1.msra.mxu0 %v80
    %1266 = vmatprep.subr.mxu0 %v85
    %1267 = vmatpush1.msra.mxu0 %v84
    %1268 = vmatprep.subr.mxu0 %v89
    %1269 = vmatpush1.msra.mxu0 %v88
    %1270 = vmatprep.subr.mxu0 %v93
    %1271 = vmatpush1.msra.mxu0 %v92
    %1272 = vmatprep.subr.mxu0 %v97
    %1273 = vmatpush1.msra.mxu0 %v96
    %1274 = vmatprep.subr.mxu0 %v101
    %1275 = vmatpush1.msra.mxu0 %v100
    %1276 = vmatprep.subr.mxu0 %v105
    %1277 = vmatpush1.msra.mxu0 %v104
    %1278 = vmatprep.subr.mxu0 %v109
    %1279 = vmatpush1.msra.mxu0 %v108
    %1280 = vmatprep.subr.mxu0 0.0
    %1281 = vmatpush1.msra.mxu0 0.0
    %1282 = vmatprep.subr.mxu0 0.0
    %1283 = vmatpush1.msra.mxu0 0.0
    %1284 = vmatprep.subr.mxu0 0.0
    %1285 = vmatpush1.msra.mxu0 0.0
    %1286 = vmatprep.subr.mxu0 0.0
    %1287 = vmatpush1.msra.mxu0 0.0
    %1288 = vmatprep.subr.mxu0 0.0
    %1289 = vmatpush1.msra.mxu0 0.0
    %1290 = vmatprep.subr.mxu0 0.0
    %1291 = vmatpush1.msra.mxu0 0.0
    %1292 = vmatprep.subr.mxu0 0.0
    %1293 = vmatpush1.msra.mxu0 0.0
    %1294 = vmatprep.subr.mxu0 0.0
    %1295 = vmatpush1.msra.mxu0 0.0
    %1296 = vmatprep.subr.mxu0 0.0
    %1297 = vmatpush1.msra.mxu0 0.0
    %1298 = vmatprep.subr.mxu0 0.0
    %1299 = vmatpush1.msra.mxu0 0.0
    %1300 = vmatprep.subr.mxu0 0.0
    %1301 = vmatpush1.msra.mxu0 0.0
    %1302 = vmatprep.subr.mxu0 0.0
    %1303 = vmatpush1.msra.mxu0 0.0
    %1304 = vmatprep.subr.mxu0 0.0
    %1305 = vmatpush1.msra.mxu0 0.0
    %1306 = vmatprep.subr.mxu0 0.0
    %1307 = vmatpush1.msra.mxu0 0.0
    %1308 = vmatprep.subr.mxu0 0.0
    %1309 = vmatpush1.msra.mxu0 0.0
    %1310 = vmatprep.subr.mxu0 0.0
    %1311 = vmatpush1.msra.mxu0 0.0
    %1312 = vmatprep.mubr.f32.mxu0 0.0
    %1313 = vmatmul.mubr.f32.gmra.mrb[0].mxu0 %v1169
    %v1314 = vpop.f32.mrb[0].mxu0
    %v1315 = vadd.f32 0.0, %v1314
    %v1316 = vpop.f32.mrb[0].mxu0
    %v1317 = vadd.f32 0.0, %v1316
    %1318 = vdwg.mxu0
    %v1319 = vadd.f32 %v1173, %v1244
    %v1320 = vadd.f32 %v1174, %v1246
    %v1321 = vadd.f32 %v1175, %v1315
    %v1322 = vadd.f32 %v1176, %v1317
    %v1323 = vxor.u32 %v1319, 2147483648
    %v1324 = vmul.f32 %v1323, 1.442695
    %v1325 = vpow.pop %v1324
    %v1326 = vadd.f32 %v1325, 1.0
    %v1327 = vrcp.pop %v1326
    %v1328 = vmul.f32 1.0, %v1327
    %v1329 = vxor.u32 %v1320, 2147483648
    %v1330 = vmul.f32 %v1329, 1.442695
    %v1331 = vpow.pop %v1330
    %v1332 = vadd.f32 %v1331, 1.0
    %v1333 = vrcp.pop %v1332
    %v1334 = vmul.f32 1.0, %v1333
    %v1335 = vtanh.pop %v1321
    %v1336 = vxor.u32 %v1322, 2147483648
    %v1337 = vmul.f32 %v1336, 1.442695
    %v1338 = vpow.pop %v1337
    %v1339 = vadd.f32 %v1338, 1.0
    %v1340 = vrcp.pop %v1339
    %v1341 = vmul.f32 1.0, %v1340
    %v1342 = vmul.f32 %v1334, %v1167
    %v1343 = vmul.f32 %v1328, %v1335
    %v1344 = vadd.f32 %v1342, %v1343
    %v1345 = vtanh.pop %v1344
    %v1346 = vmul.f32 %v1341, %v1345
    %s1347 = scalar_lea.vmem [#allocation9], 48
    %1348 = vst [vmem:[%s1347] sm:$0xff] %v1346
    %s1349 = scalar_lea.vmem [#allocation4], 224
    %v1350 = vld [vmem:[%s1349] sm:$0xff]
    %v1351 = vld [vmem:[%s1349 + $0x8] sm:$0xff]
    %v1352 = vld [vmem:[%s1349 + $0x10] sm:$0xff]
    %v1353 = vld [vmem:[%s1349 + $0x18] sm:$0xff]
    %1354 = vmatprep.subr.mxu0 %v47
    %1355 = vmatpush1.msra.mxu0 %v46
    %1356 = vmatprep.subr.mxu0 %v51
    %1357 = vmatpush1.msra.mxu0 %v50
    %1358 = vmatprep.subr.mxu0 %v55
    %1359 = vmatpush1.msra.mxu0 %v54
    %1360 = vmatprep.subr.mxu0 %v59
    %1361 = vmatpush1.msra.mxu0 %v58
    %1362 = vmatprep.subr.mxu0 %v63
    %1363 = vmatpush1.msra.mxu0 %v62
    %1364 = vmatprep.subr.mxu0 %v67
    %1365 = vmatpush1.msra.mxu0 %v66
    %1366 = vmatprep.subr.mxu0 %v71
    %1367 = vmatpush1.msra.mxu0 %v70
    %1368 = vmatprep.subr.mxu0 %v75
    %1369 = vmatpush1.msra.mxu0 %v74
    %1370 = vmatprep.subr.mxu0 %v79
    %1371 = vmatpush1.msra.mxu0 %v78
    %1372 = vmatprep.subr.mxu0 %v83
    %1373 = vmatpush1.msra.mxu0 %v82
    %1374 = vmatprep.subr.mxu0 %v87
    %1375 = vmatpush1.msra.mxu0 %v86
    %1376 = vmatprep.subr.mxu0 %v91
    %1377 = vmatpush1.msra.mxu0 %v90
    %1378 = vmatprep.subr.mxu0 %v95
    %1379 = vmatpush1.msra.mxu0 %v94
    %1380 = vmatprep.subr.mxu0 %v99
    %1381 = vmatpush1.msra.mxu0 %v98
    %1382 = vmatprep.subr.mxu0 %v103
    %1383 = vmatpush1.msra.mxu0 %v102
    %1384 = vmatprep.subr.mxu0 %v107
    %1385 = vmatpush1.msra.mxu0 %v106
    %1386 = vmatprep.subr.mxu0 0.0
    %1387 = vmatpush1.msra.mxu0 0.0
    %1388 = vmatprep.subr.mxu0 0.0
    %1389 = vmatpush1.msra.mxu0 0.0
    %1390 = vmatprep.subr.mxu0 0.0
    %1391 = vmatpush1.msra.mxu0 0.0
    %1392 = vmatprep.subr.mxu0 0.0
    %1393 = vmatpush1.msra.mxu0 0.0
    %1394 = vmatprep.subr.mxu0 0.0
    %1395 = vmatpush1.msra.mxu0 0.0
    %1396 = vmatprep.subr.mxu0 0.0
    %1397 = vmatpush1.msra.mxu0 0.0
    %1398 = vmatprep.subr.mxu0 0.0
    %1399 = vmatpush1.msra.mxu0 0.0
    %1400 = vmatprep.subr.mxu0 0.0
    %1401 = vmatpush1.msra.mxu0 0.0
    %1402 = vmatprep.subr.mxu0 0.0
    %1403 = vmatpush1.msra.mxu0 0.0
    %1404 = vmatprep.subr.mxu0 0.0
    %1405 = vmatpush1.msra.mxu0 0.0
    %1406 = vmatprep.subr.mxu0 0.0
    %1407 = vmatpush1.msra.mxu0 0.0
    %1408 = vmatprep.subr.mxu0 0.0
    %1409 = vmatpush1.msra.mxu0 0.0
    %1410 = vmatprep.subr.mxu0 0.0
    %1411 = vmatpush1.msra.mxu0 0.0
    %1412 = vmatprep.subr.mxu0 0.0
    %1413 = vmatpush1.msra.mxu0 0.0
    %1414 = vmatprep.subr.mxu0 0.0
    %1415 = vmatpush1.msra.mxu0 0.0
    %1416 = vmatprep.subr.mxu0 0.0
    %1417 = vmatpush1.msra.mxu0 0.0
    %1418 = vmatprep.mubr.f32.mxu0 0.0
    %1419 = vmatmul.mubr.f32.gmra.mrb[0].mxu0 %v1346
    %v1420 = vpop.f32.mrb[0].mxu0
    %v1421 = vadd.f32 0.0, %v1420
    %v1422 = vpop.f32.mrb[0].mxu0
    %v1423 = vadd.f32 0.0, %v1422
    %1424 = vdwg.mxu0
    %1425 = vmatprep.subr.mxu0 %v49
    %1426 = vmatpush1.msra.mxu0 %v48
    %1427 = vmatprep.subr.mxu0 %v53
    %1428 = vmatpush1.msra.mxu0 %v52
    %1429 = vmatprep.subr.mxu0 %v57
    %1430 = vmatpush1.msra.mxu0 %v56
    %1431 = vmatprep.subr.mxu0 %v61
    %1432 = vmatpush1.msra.mxu0 %v60
    %1433 = vmatprep.subr.mxu0 %v65
    %1434 = vmatpush1.msra.mxu0 %v64
    %1435 = vmatprep.subr.mxu0 %v69
    %1436 = vmatpush1.msra.mxu0 %v68
    %1437 = vmatprep.subr.mxu0 %v73
    %1438 = vmatpush1.msra.mxu0 %v72
    %1439 = vmatprep.subr.mxu0 %v77
    %1440 = vmatpush1.msra.mxu0 %v76
    %1441 = vmatprep.subr.mxu0 %v81
    %1442 = vmatpush1.msra.mxu0 %v80
    %1443 = vmatprep.subr.mxu0 %v85
    %1444 = vmatpush1.msra.mxu0 %v84
    %1445 = vmatprep.subr.mxu0 %v89
    %1446 = vmatpush1.msra.mxu0 %v88
    %1447 = vmatprep.subr.mxu0 %v93
    %1448 = vmatpush1.msra.mxu0 %v92
    %1449 = vmatprep.subr.mxu0 %v97
    %1450 = vmatpush1.msra.mxu0 %v96
    %1451 = vmatprep.subr.mxu0 %v101
    %1452 = vmatpush1.msra.mxu0 %v100
    %1453 = vmatprep.subr.mxu0 %v105
    %1454 = vmatpush1.msra.mxu0 %v104
    %1455 = vmatprep.subr.mxu0 %v109
    %1456 = vmatpush1.msra.mxu0 %v108
    %1457 = vmatprep.subr.mxu0 0.0
    %1458 = vmatpush1.msra.mxu0 0.0
    %1459 = vmatprep.subr.mxu0 0.0
    %1460 = vmatpush1.msra.mxu0 0.0
    %1461 = vmatprep.subr.mxu0 0.0
    %1462 = vmatpush1.msra.mxu0 0.0
    %1463 = vmatprep.subr.mxu0 0.0
    %1464 = vmatpush1.msra.mxu0 0.0
    %1465 = vmatprep.subr.mxu0 0.0
    %1466 = vmatpush1.msra.mxu0 0.0
    %1467 = vmatprep.subr.mxu0 0.0
    %1468 = vmatpush1.msra.mxu0 0.0
    %1469 = vmatprep.subr.mxu0 0.0
    %1470 = vmatpush1.msra.mxu0 0.0
    %1471 = vmatprep.subr.mxu0 0.0
    %1472 = vmatpush1.msra.mxu0 0.0
    %1473 = vmatprep.subr.mxu0 0.0
    %1474 = vmatpush1.msra.mxu0 0.0
    %1475 = vmatprep.subr.mxu0 0.0
    %1476 = vmatpush1.msra.mxu0 0.0
    %1477 = vmatprep.subr.mxu0 0.0
    %1478 = vmatpush1.msra.mxu0 0.0
    %1479 = vmatprep.subr.mxu0 0.0
    %1480 = vmatpush1.msra.mxu0 0.0
    %1481 = vmatprep.subr.mxu0 0.0
    %1482 = vmatpush1.msra.mxu0 0.0
    %1483 = vmatprep.subr.mxu0 0.0
    %1484 = vmatpush1.msra.mxu0 0.0
    %1485 = vmatprep.subr.mxu0 0.0
    %1486 = vmatpush1.msra.mxu0 0.0
    %1487 = vmatprep.subr.mxu0 0.0
    %1488 = vmatpush1.msra.mxu0 0.0
    %1489 = vmatprep.mubr.f32.mxu0 0.0
    %1490 = vmatmul.mubr.f32.gmra.mrb[0].mxu0 %v1346
    %v1491 = vpop.f32.mrb[0].mxu0
    %v1492 = vadd.f32 0.0, %v1491
    %v1493 = vpop.f32.mrb[0].mxu0
    %v1494 = vadd.f32 0.0, %v1493
    %1495 = vdwg.mxu0
    %v1496 = vadd.f32 %v1350, %v1421
    %v1497 = vadd.f32 %v1351, %v1423
    %v1498 = vadd.f32 %v1352, %v1492
    %v1499 = vadd.f32 %v1353, %v1494
    %v1500 = vxor.u32 %v1496, 2147483648
    %v1501 = vmul.f32 %v1500, 1.442695
    %v1502 = vpow.pop %v1501
    %v1503 = vadd.f32 %v1502, 1.0
    %v1504 = vrcp.pop %v1503
    %v1505 = vmul.f32 1.0, %v1504
    %v1506 = vxor.u32 %v1497, 2147483648
    %v1507 = vmul.f32 %v1506, 1.442695
    %v1508 = vpow.pop %v1507
    %v1509 = vadd.f32 %v1508, 1.0
    %v1510 = vrcp.pop %v1509
    %v1511 = vmul.f32 1.0, %v1510
    %v1512 = vtanh.pop %v1498
    %v1513 = vxor.u32 %v1499, 2147483648
    %v1514 = vmul.f32 %v1513, 1.442695
    %v1515 = vpow.pop %v1514
    %v1516 = vadd.f32 %v1515, 1.0
    %v1517 = vrcp.pop %v1516
    %v1518 = vmul.f32 1.0, %v1517
    %v1519 = vmul.f32 %v1511, %v1344
    %v1520 = vmul.f32 %v1505, %v1512
    %v1521 = vadd.f32 %v1519, %v1520
    %v1522 = vtanh.pop %v1521
    %v1523 = vmul.f32 %v1518, %v1522
    %s1524 = scalar_lea.vmem [#allocation9], 56
    %1525 = vst [vmem:[%s1524] sm:$0xff] %v1523
    %1526 = vst [vmem:[#allocation2] sm:$0xff] %v1523
    %1527 = vst [vmem:[#allocation3] sm:$0xff] %v1521
    // Predicated region
    $region22: #{tpu_custom_call.1} parent=1 // pred_check
      _
    $region23: #{tpu_custom_call.1} parent=1 // pred_check_branch
      %1529 = sbr.rel (0) target = $region25
    $region24: #{tpu_custom_call.1} parent=1 // pred_region
      %s1531 = ssub.s32 1024, 1024
      %1532 = vsyncadd [#allocation6], %s1531
      %s1533 = sshll.u32 [#allocation9], 4
      %s1534 = int_to_ptr.vmem [resolvable:$true] %s1533
      %1539 = dma.vmem_to_hbm [thread:$0]  %s1534, 1024, %s2, [#allocation6], 128, 128, 8
    $region25: #{tpu_custom_call.1} parent=1 // pred_fallthru
      _
    // Predicated region
    $region26: #{tpu_custom_call.1} parent=1 // pred_check
      _
    $region27: #{tpu_custom_call.1} parent=1 // pred_check_branch
      %1541 = sbr.rel (0) target = $region29
    $region28: #{tpu_custom_call.1} parent=1 // pred_region
      %1542 = dma.done [#allocation6], 1024
    $region29: #{tpu_custom_call.1} parent=1 // pred_fallthru
      _
    %1543 = vsyncpa [#allocation5], 1
    %1544 = vsyncpa [#allocation8], 1
    %1545 = vsyncpa [#allocation6], 1

</llo_original>
